<compile_context>
chip_gen: v6e
topology: v6e:2x2x1
jax: 0.10.0
libtpu: 0.0.40
codegen_flags: <defaults>
</compile_context>

<pallas_src>
import functools

import jax
import jax.numpy as jnp
from jax import lax
from jax.experimental import pallas as pl
from jax.experimental.pallas import tpu as pltpu

LANE = 128


def _round_up(n, m):
    return ((n + m - 1) // m) * m


def _pad_to(x, shape):
    return jnp.pad(x, [(0, t - s) for s, t in zip(x.shape, shape)])


# ----------------------------------------------------------------------------
# Fused Pallas kernel:
#   obj_out  = obj_flat @ W_obj + b_obj                       (object encoder)
#   h_{t+1}  = tanh(x_t @ W_xh + h_t @ W_hh + b_h), t=0..T-1   (text encoder)
#   cat      = relu([obj_out, text_out])                       (Psi's relu)
#   h1       = relu(cat @ W1 + b1)
#   h2       = relu(h1  @ W2 + b2)
#   out      =       h2  @ W3 + b3
# ----------------------------------------------------------------------------
def psi_fused_kernel(obj_ref, text_ref,
                     w_obj_ref, b_obj_ref,
                     wxh_ref, whh_ref, bh_ref,
                     w1_ref, b1_ref, w2_ref, b2_ref, w3_ref, b3_ref,
                     out_ref, cat_ref,
                     *, seq_len, concat_dim, matmul_dtype):
    f32 = jnp.float32

    # --- object encoder (projection of the flattened NCHW tensor) ----------
    obj_out = jnp.dot(obj_ref[...].astype(matmul_dtype), w_obj_ref[...],
                      preferred_element_type=f32) + b_obj_ref[...]

    # --- text encoder: Elman RNN, weights resident in VMEM -----------------
    wxh = wxh_ref[...]
    whh = whh_ref[...]
    bh = bh_ref[...]
    h0 = jnp.zeros((obj_ref.shape[0], concat_dim), f32)   # init_hidden(batch)

    def rnn_step(t, h):
        x_t = text_ref[t]                                   # (B, E)
        return jnp.tanh(
            jnp.dot(x_t.astype(matmul_dtype), wxh, preferred_element_type=f32)
            + jnp.dot(h.astype(matmul_dtype), whh, preferred_element_type=f32)
            + bh)

    text_out = lax.fori_loop(0, seq_len, rnn_step, h0, unroll=True)

    # --- concat both halves into one VMEM scratch; relu applied once -------
    cat_ref[:, :concat_dim] = obj_out
    cat_ref[:, concat_dim:] = text_out
    cat = jnp.maximum(cat_ref[...], 0.0).astype(matmul_dtype)

    # --- MLP head: one K = 2*concat_dim push, then two lane-dense layers ---
    h1 = jnp.dot(cat, w1_ref[...], preferred_element_type=f32)
    h1 = jnp.maximum(h1 + b1_ref[...], 0.0)                 # epilogue kept f32
    h2 = jnp.dot(h1.astype(matmul_dtype), w2_ref[...], preferred_element_type=f32)
    h2 = jnp.maximum(h2 + b2_ref[...], 0.0)
    out = jnp.dot(h2.astype(matmul_dtype), w3_ref[...], preferred_element_type=f32)
    out_ref[...] = (out + b3_ref[...]).astype(out_ref.dtype)


# ----------------------------------------------------------------------------
# One-time parameter preparation (hoisted out of the forward pass).
# ----------------------------------------------------------------------------
def prepare_psi_params(params, *, matmul_dtype=jnp.float32):
    cd = params["w_obj"].shape[1]
    # Guard the split/concat assumption: text encoder width == concat_dim.
    assert params["wxh"].shape[1] == cd and params["whh"].shape == (cd, cd), \
        "text encoder hidden width must equal concat_dim"
    assert params["w1"].shape[0] == 2 * cd, \
        "fc1 input must be 2 * concat_dim (obj half + text half)"

    hd = params["w1"].shape[1]
    od = params["w3"].shape[1]
    hd_p = _round_up(hd, LANE)
    od_p = _round_up(od, LANE)
    mm = matmul_dtype

    # Padded lanes are zero in both weights and biases; relu(0) == 0 keeps them
    # zero through every layer, so the padding never contaminates real lanes.
    prepared = {
        "w_obj": params["w_obj"].astype(mm),
        "b_obj": params["b_obj"].reshape(1, cd).astype(jnp.float32),
        "wxh": params["wxh"].astype(mm),
        "whh": params["whh"].astype(mm),
        "bh": params["bh"].reshape(1, cd).astype(jnp.float32),
        "w1": _pad_to(params["w1"], (2 * cd, hd_p)).astype(mm),
        "b1": _pad_to(params["b1"].reshape(1, hd), (1, hd_p)).astype(jnp.float32),
        "w2": _pad_to(params["w2"], (hd_p, hd_p)).astype(mm),
        "b2": _pad_to(params["b2"].reshape(1, hd), (1, hd_p)).astype(jnp.float32),
        "w3": _pad_to(params["w3"], (hd_p, od_p)).astype(mm),
        "b3": _pad_to(params["b3"].reshape(1, od), (1, od_p)).astype(jnp.float32),
    }
    cfg = dict(concat_dim=cd, out_dim=od, out_pad=od_p, matmul_dtype=mm)
    return prepared, cfg


# ----------------------------------------------------------------------------
# Forward: mirrors Psi.forward(inp = (obj, text)).
# ----------------------------------------------------------------------------
def psi_forward(obj, text, prepared, *, cfg):
    B = obj.shape[0]
    T = text.shape[1]
    obj_flat = obj.reshape(B, -1).astype(jnp.float32)            # flatten NCHW
    text_tbe = jnp.transpose(text, (1, 0, 2)).astype(jnp.float32)  # (T, B, E)

    kernel = functools.partial(psi_fused_kernel,
                               seq_len=T,
                               concat_dim=cfg["concat_dim"],
                               matmul_dtype=cfg["matmul_dtype"])
    vmem = pl.BlockSpec(memory_space=pltpu.MemorySpace.VMEM)

    # Single invocation, full batch in one block; everything resident in VMEM.
    out_p = pl.pallas_call(
        kernel,
        out_shape=jax.ShapeDtypeStruct((B, cfg["out_pad"]), jnp.float32),
        in_specs=[vmem] * 13,
        out_specs=vmem,
        scratch_shapes=[pltpu.VMEM((B, 2 * cfg["concat_dim"]), jnp.float32)],
    )(obj_flat, text_tbe,
      prepared["w_obj"], prepared["b_obj"],
      prepared["wxh"], prepared["whh"], prepared["bh"],
      prepared["w1"], prepared["b1"],
      prepared["w2"], prepared["b2"],
      prepared["w3"], prepared["b3"])

    return out_p[:, :cfg["out_dim"]]


# ----------------------------------------------------------------------------
# Pure-JAX reference (for the correctness check).
# ----------------------------------------------------------------------------
def psi_ref(obj, text, params):
    B = obj.shape[0]
    cd = params["w_obj"].shape[1]
    obj_out = obj.reshape(B, -1) @ params["w_obj"] + params["b_obj"]
    text_tbe = jnp.transpose(text, (1, 0, 2))

    def step(h, x_t):
        return jnp.tanh(x_t @ params["wxh"] + h @ params["whh"] + params["bh"]), None

    text_out, _ = lax.scan(step, jnp.zeros((B, cd), jnp.float32), text_tbe)
    concat = jnp.maximum(jnp.concatenate([obj_out, text_out], axis=1), 0.0)
    h = jnp.maximum(concat @ params["w1"] + params["b1"], 0.0)
    h = jnp.maximum(h @ params["w2"] + params["b2"], 0.0)
    return h @ params["w3"] + params["b3"]


# ----------------------------------------------------------------------------
# Main
# ----------------------------------------------------------------------------
if __name__ == "__main__":
    B, C, H, W = 16, 4, 8, 8          # obj: NCHW
    T, E = 6, 8                       # text: (B, T, E) token embeddings
    concat_dim, hidden_dim, out_dim = 32, 32, 16

    key = jax.random.PRNGKey(0)
    keys = jax.random.split(key, 12)

    obj = jax.random.normal(keys[0], (B, C, H, W), jnp.float32)
    text = jax.random.normal(keys[1], (B, T, E), jnp.float32)

    obj_feat = C * H * W
    params = {
        # object_model stand-in (flatten + linear)
        "w_obj": 0.05 * jax.random.normal(keys[2], (obj_feat, concat_dim), jnp.float32),
        "b_obj": 0.01 * jax.random.normal(keys[3], (concat_dim,), jnp.float32),
        # text_model stand-in (one-layer Elman RNN)
        "wxh": 0.1 * jax.random.normal(keys[4], (E, concat_dim), jnp.float32),
        "whh": 0.1 * jax.random.normal(keys[5], (concat_dim, concat_dim), jnp.float32),
        "bh": 0.01 * jax.random.normal(keys[6], (concat_dim,), jnp.float32),
        # Psi's own fc1/fc2/fc3, stored as (in, out); biases 1-D like nn.Linear
        "w1": 0.1 * jax.random.normal(keys[7], (2 * concat_dim, hidden_dim), jnp.float32),
        "b1": 0.01 * jax.random.normal(keys[8], (hidden_dim,), jnp.float32),
        "w2": 0.1 * jax.random.normal(keys[9], (hidden_dim, hidden_dim), jnp.float32),
        "b2": 0.01 * jax.random.normal(keys[10], (hidden_dim,), jnp.float32),
        "w3": 0.1 * jax.random.normal(keys[11], (hidden_dim, out_dim), jnp.float32),
        "b3": jnp.zeros((out_dim,), jnp.float32),
    }

    # One-time weight prep (pad / cast / validate) — never re-run per forward.
    # On v6e/v7x: matmul_dtype=jnp.bfloat16 (needs a looser tolerance below).
    prepared, cfg = prepare_psi_params(params, matmul_dtype=jnp.float32)

    fwd = jax.jit(functools.partial(psi_forward, cfg=cfg))
    out = jax.block_until_ready(fwd(obj, text, prepared))
    assert out.shape == (B, out_dim), out.shape

    ref = psi_ref(obj, text, params)
    assert jnp.allclose(out, ref, rtol=1e-4, atol=1e-4), \
        f"mismatch vs reference, max abs err = {float(jnp.max(jnp.abs(out - ref)))}"

    print("KERNEL_OK")
</pallas_src>

<mosaic_0001>
module attributes {stable_mosaic.version = 11 : i64} {
  func.func @psi_fused_kernel(%arg0: memref<16x256xf32, #tpu.memory_space<vmem>>, %arg1: memref<6x16x8xf32, #tpu.memory_space<vmem>>, %arg2: memref<256x32xf32, #tpu.memory_space<vmem>>, %arg3: memref<1x32xf32, #tpu.memory_space<vmem>>, %arg4: memref<8x32xf32, #tpu.memory_space<vmem>>, %arg5: memref<32x32xf32, #tpu.memory_space<vmem>>, %arg6: memref<1x32xf32, #tpu.memory_space<vmem>>, %arg7: memref<64x128xf32, #tpu.memory_space<vmem>>, %arg8: memref<1x128xf32, #tpu.memory_space<vmem>>, %arg9: memref<128x128xf32, #tpu.memory_space<vmem>>, %arg10: memref<1x128xf32, #tpu.memory_space<vmem>>, %arg11: memref<128x128xf32, #tpu.memory_space<vmem>>, %arg12: memref<1x128xf32, #tpu.memory_space<vmem>>, %arg13: memref<16x128xf32, #tpu.memory_space<vmem>>, %arg14: memref<16x64xf32, #tpu.memory_space<vmem>>) attributes {dimension_semantics = [], scalar_prefetch = 0 : i64, scratch_operands = 1 : i64, tpu.core_type = #tpu.core_type<tc>} {
    %c0 = arith.constant 0 : index
    %c0_0 = arith.constant 0 : index
    %0 = vector.load %arg0[%c0, %c0_0] : memref<16x256xf32, #tpu.memory_space<vmem>>, vector<16x256xf32>
    %c0_1 = arith.constant 0 : index
    %c0_2 = arith.constant 0 : index
    %1 = vector.load %arg2[%c0_1, %c0_2] : memref<256x32xf32, #tpu.memory_space<vmem>>, vector<256x32xf32>
    %cst = arith.constant dense<0.000000e+00> : vector<16x32xf32>
    %2 = tpu.matmul %0, %1, %cst {dimension_numbers = #tpu.dot_dimension_numbers<[1], [0], [0], [1], [0, 0, 1, 1], [], []>} : vector<16x256xf32>, vector<256x32xf32>, vector<16x32xf32> -> vector<16x32xf32>
    %c0_3 = arith.constant 0 : index
    %c0_4 = arith.constant 0 : index
    %3 = vector.load %arg3[%c0_3, %c0_4] : memref<1x32xf32, #tpu.memory_space<vmem>>, vector<1x32xf32>
    %4 = vector.broadcast %3 : vector<1x32xf32> to vector<16x32xf32>
    %5 = arith.addf %2, %4 : vector<16x32xf32>
    %c0_5 = arith.constant 0 : index
    %c0_6 = arith.constant 0 : index
    %6 = vector.load %arg4[%c0_5, %c0_6] : memref<8x32xf32, #tpu.memory_space<vmem>>, vector<8x32xf32>
    %c0_7 = arith.constant 0 : index
    %c0_8 = arith.constant 0 : index
    %7 = vector.load %arg5[%c0_7, %c0_8] : memref<32x32xf32, #tpu.memory_space<vmem>>, vector<32x32xf32>
    %c0_9 = arith.constant 0 : index
    %c0_10 = arith.constant 0 : index
    %8 = vector.load %arg6[%c0_9, %c0_10] : memref<1x32xf32, #tpu.memory_space<vmem>>, vector<1x32xf32>
    %cst_11 = arith.constant 0.000000e+00 : f32
    %9 = vector.broadcast %cst_11 : f32 to vector<16x32xf32>
    %c0_i32 = arith.constant 0 : i32
    %10 = arith.index_cast %c0_i32 : i32 to index
    %c0_12 = arith.constant 0 : index
    %c0_13 = arith.constant 0 : index
    %11 = vector.load %arg1[%10, %c0_12, %c0_13] : memref<6x16x8xf32, #tpu.memory_space<vmem>>, vector<1x16x8xf32>
    %12 = vector.shape_cast %11 : vector<1x16x8xf32> to vector<16x8xf32>
    %cst_14 = arith.constant dense<0.000000e+00> : vector<16x32xf32>
    %13 = tpu.matmul %12, %6, %cst_14 {dimension_numbers = #tpu.dot_dimension_numbers<[1], [0], [0], [1], [0, 0, 1, 1], [], []>} : vector<16x8xf32>, vector<8x32xf32>, vector<16x32xf32> -> vector<16x32xf32>
    %cst_15 = arith.constant dense<0.000000e+00> : vector<16x32xf32>
    %14 = tpu.matmul %9, %7, %cst_15 {dimension_numbers = #tpu.dot_dimension_numbers<[1], [0], [0], [1], [0, 0, 1, 1], [], []>} : vector<16x32xf32>, vector<32x32xf32>, vector<16x32xf32> -> vector<16x32xf32>
    %15 = arith.addf %13, %14 : vector<16x32xf32>
    %16 = vector.broadcast %8 : vector<1x32xf32> to vector<16x32xf32>
    %17 = arith.addf %15, %16 : vector<16x32xf32>
    %18 = math.tanh %17 : vector<16x32xf32>
    %c1_i32 = arith.constant 1 : i32
    %19 = arith.index_cast %c1_i32 : i32 to index
    %c0_16 = arith.constant 0 : index
    %c0_17 = arith.constant 0 : index
    %20 = vector.load %arg1[%19, %c0_16, %c0_17] : memref<6x16x8xf32, #tpu.memory_space<vmem>>, vector<1x16x8xf32>
    %21 = vector.shape_cast %20 : vector<1x16x8xf32> to vector<16x8xf32>
    %cst_18 = arith.constant dense<0.000000e+00> : vector<16x32xf32>
    %22 = tpu.matmul %21, %6, %cst_18 {dimension_numbers = #tpu.dot_dimension_numbers<[1], [0], [0], [1], [0, 0, 1, 1], [], []>} : vector<16x8xf32>, vector<8x32xf32>, vector<16x32xf32> -> vector<16x32xf32>
    %cst_19 = arith.constant dense<0.000000e+00> : vector<16x32xf32>
    %23 = tpu.matmul %18, %7, %cst_19 {dimension_numbers = #tpu.dot_dimension_numbers<[1], [0], [0], [1], [0, 0, 1, 1], [], []>} : vector<16x32xf32>, vector<32x32xf32>, vector<16x32xf32> -> vector<16x32xf32>
    %24 = arith.addf %22, %23 : vector<16x32xf32>
    %25 = vector.broadcast %8 : vector<1x32xf32> to vector<16x32xf32>
    %26 = arith.addf %24, %25 : vector<16x32xf32>
    %27 = math.tanh %26 : vector<16x32xf32>
    %c2_i32 = arith.constant 2 : i32
    %28 = arith.index_cast %c2_i32 : i32 to index
    %c0_20 = arith.constant 0 : index
    %c0_21 = arith.constant 0 : index
    %29 = vector.load %arg1[%28, %c0_20, %c0_21] : memref<6x16x8xf32, #tpu.memory_space<vmem>>, vector<1x16x8xf32>
    %30 = vector.shape_cast %29 : vector<1x16x8xf32> to vector<16x8xf32>
    %cst_22 = arith.constant dense<0.000000e+00> : vector<16x32xf32>
    %31 = tpu.matmul %30, %6, %cst_22 {dimension_numbers = #tpu.dot_dimension_numbers<[1], [0], [0], [1], [0, 0, 1, 1], [], []>} : vector<16x8xf32>, vector<8x32xf32>, vector<16x32xf32> -> vector<16x32xf32>
    %cst_23 = arith.constant dense<0.000000e+00> : vector<16x32xf32>
    %32 = tpu.matmul %27, %7, %cst_23 {dimension_numbers = #tpu.dot_dimension_numbers<[1], [0], [0], [1], [0, 0, 1, 1], [], []>} : vector<16x32xf32>, vector<32x32xf32>, vector<16x32xf32> -> vector<16x32xf32>
    %33 = arith.addf %31, %32 : vector<16x32xf32>
    %34 = vector.broadcast %8 : vector<1x32xf32> to vector<16x32xf32>
    %35 = arith.addf %33, %34 : vector<16x32xf32>
    %36 = math.tanh %35 : vector<16x32xf32>
    %c3_i32 = arith.constant 3 : i32
    %37 = arith.index_cast %c3_i32 : i32 to index
    %c0_24 = arith.constant 0 : index
    %c0_25 = arith.constant 0 : index
    %38 = vector.load %arg1[%37, %c0_24, %c0_25] : memref<6x16x8xf32, #tpu.memory_space<vmem>>, vector<1x16x8xf32>
    %39 = vector.shape_cast %38 : vector<1x16x8xf32> to vector<16x8xf32>
    %cst_26 = arith.constant dense<0.000000e+00> : vector<16x32xf32>
    %40 = tpu.matmul %39, %6, %cst_26 {dimension_numbers = #tpu.dot_dimension_numbers<[1], [0], [0], [1], [0, 0, 1, 1], [], []>} : vector<16x8xf32>, vector<8x32xf32>, vector<16x32xf32> -> vector<16x32xf32>
    %cst_27 = arith.constant dense<0.000000e+00> : vector<16x32xf32>
    %41 = tpu.matmul %36, %7, %cst_27 {dimension_numbers = #tpu.dot_dimension_numbers<[1], [0], [0], [1], [0, 0, 1, 1], [], []>} : vector<16x32xf32>, vector<32x32xf32>, vector<16x32xf32> -> vector<16x32xf32>
    %42 = arith.addf %40, %41 : vector<16x32xf32>
    %43 = vector.broadcast %8 : vector<1x32xf32> to vector<16x32xf32>
    %44 = arith.addf %42, %43 : vector<16x32xf32>
    %45 = math.tanh %44 : vector<16x32xf32>
    %c4_i32 = arith.constant 4 : i32
    %46 = arith.index_cast %c4_i32 : i32 to index
    %c0_28 = arith.constant 0 : index
    %c0_29 = arith.constant 0 : index
    %47 = vector.load %arg1[%46, %c0_28, %c0_29] : memref<6x16x8xf32, #tpu.memory_space<vmem>>, vector<1x16x8xf32>
    %48 = vector.shape_cast %47 : vector<1x16x8xf32> to vector<16x8xf32>
    %cst_30 = arith.constant dense<0.000000e+00> : vector<16x32xf32>
    %49 = tpu.matmul %48, %6, %cst_30 {dimension_numbers = #tpu.dot_dimension_numbers<[1], [0], [0], [1], [0, 0, 1, 1], [], []>} : vector<16x8xf32>, vector<8x32xf32>, vector<16x32xf32> -> vector<16x32xf32>
    %cst_31 = arith.constant dense<0.000000e+00> : vector<16x32xf32>
    %50 = tpu.matmul %45, %7, %cst_31 {dimension_numbers = #tpu.dot_dimension_numbers<[1], [0], [0], [1], [0, 0, 1, 1], [], []>} : vector<16x32xf32>, vector<32x32xf32>, vector<16x32xf32> -> vector<16x32xf32>
    %51 = arith.addf %49, %50 : vector<16x32xf32>
    %52 = vector.broadcast %8 : vector<1x32xf32> to vector<16x32xf32>
    %53 = arith.addf %51, %52 : vector<16x32xf32>
    %54 = math.tanh %53 : vector<16x32xf32>
    %c5_i32 = arith.constant 5 : i32
    %55 = arith.index_cast %c5_i32 : i32 to index
    %c0_32 = arith.constant 0 : index
    %c0_33 = arith.constant 0 : index
    %56 = vector.load %arg1[%55, %c0_32, %c0_33] : memref<6x16x8xf32, #tpu.memory_space<vmem>>, vector<1x16x8xf32>
    %57 = vector.shape_cast %56 : vector<1x16x8xf32> to vector<16x8xf32>
    %cst_34 = arith.constant dense<0.000000e+00> : vector<16x32xf32>
    %58 = tpu.matmul %57, %6, %cst_34 {dimension_numbers = #tpu.dot_dimension_numbers<[1], [0], [0], [1], [0, 0, 1, 1], [], []>} : vector<16x8xf32>, vector<8x32xf32>, vector<16x32xf32> -> vector<16x32xf32>
    %cst_35 = arith.constant dense<0.000000e+00> : vector<16x32xf32>
    %59 = tpu.matmul %54, %7, %cst_35 {dimension_numbers = #tpu.dot_dimension_numbers<[1], [0], [0], [1], [0, 0, 1, 1], [], []>} : vector<16x32xf32>, vector<32x32xf32>, vector<16x32xf32> -> vector<16x32xf32>
    %60 = arith.addf %58, %59 : vector<16x32xf32>
    %61 = vector.broadcast %8 : vector<1x32xf32> to vector<16x32xf32>
    %62 = arith.addf %60, %61 : vector<16x32xf32>
    %63 = math.tanh %62 : vector<16x32xf32>
    %c6_i32 = arith.constant 6 : i32
    %c0_36 = arith.constant 0 : index
    %c0_37 = arith.constant 0 : index
    %64 = vector.load %arg14[%c0_36, %c0_37] : memref<16x64xf32, #tpu.memory_space<vmem>>, vector<16x32xf32>
    tpu.vector_store %arg14[%c0_36, %c0_37], %5 {strides = array<i32>} : memref<16x64xf32, #tpu.memory_space<vmem>>, vector<16x32xf32>,
    %c0_38 = arith.constant 0 : index
    %c32 = arith.constant 32 : index
    %65 = vector.load %arg14[%c0_38, %c32] : memref<16x64xf32, #tpu.memory_space<vmem>>, vector<16x32xf32>
    tpu.vector_store %arg14[%c0_38, %c32], %63 {strides = array<i32>} : memref<16x64xf32, #tpu.memory_space<vmem>>, vector<16x32xf32>,
    %c0_39 = arith.constant 0 : index
    %c0_40 = arith.constant 0 : index
    %66 = vector.load %arg14[%c0_39, %c0_40] : memref<16x64xf32, #tpu.memory_space<vmem>>, vector<16x64xf32>
    %cst_41 = arith.constant 0.000000e+00 : f32
    %67 = vector.broadcast %cst_41 : f32 to vector<16x64xf32>
    %68 = arith.maximumf %66, %67 : vector<16x64xf32>
    %c0_42 = arith.constant 0 : index
    %c0_43 = arith.constant 0 : index
    %69 = vector.load %arg7[%c0_42, %c0_43] : memref<64x128xf32, #tpu.memory_space<vmem>>, vector<64x128xf32>
    %cst_44 = arith.constant dense<0.000000e+00> : vector<16x128xf32>
    %70 = tpu.matmul %68, %69, %cst_44 {dimension_numbers = #tpu.dot_dimension_numbers<[1], [0], [0], [1], [0, 0, 1, 1], [], []>} : vector<16x64xf32>, vector<64x128xf32>, vector<16x128xf32> -> vector<16x128xf32>
    %c0_45 = arith.constant 0 : index
    %c0_46 = arith.constant 0 : index
    %71 = vector.load %arg8[%c0_45, %c0_46] : memref<1x128xf32, #tpu.memory_space<vmem>>, vector<1x128xf32>
    %72 = vector.broadcast %71 : vector<1x128xf32> to vector<16x128xf32>
    %73 = arith.addf %70, %72 : vector<16x128xf32>
    %cst_47 = arith.constant 0.000000e+00 : f32
    %74 = vector.broadcast %cst_47 : f32 to vector<16x128xf32>
    %75 = arith.maximumf %73, %74 : vector<16x128xf32>
    %c0_48 = arith.constant 0 : index
    %c0_49 = arith.constant 0 : index
    %76 = vector.load %arg9[%c0_48, %c0_49] : memref<128x128xf32, #tpu.memory_space<vmem>>, vector<128x128xf32>
    %cst_50 = arith.constant dense<0.000000e+00> : vector<16x128xf32>
    %77 = tpu.matmul %75, %76, %cst_50 {dimension_numbers = #tpu.dot_dimension_numbers<[1], [0], [0], [1], [0, 0, 1, 1], [], []>} : vector<16x128xf32>, vector<128x128xf32>, vector<16x128xf32> -> vector<16x128xf32>
    %c0_51 = arith.constant 0 : index
    %c0_52 = arith.constant 0 : index
    %78 = vector.load %arg10[%c0_51, %c0_52] : memref<1x128xf32, #tpu.memory_space<vmem>>, vector<1x128xf32>
    %79 = vector.broadcast %78 : vector<1x128xf32> to vector<16x128xf32>
    %80 = arith.addf %77, %79 : vector<16x128xf32>
    %cst_53 = arith.constant 0.000000e+00 : f32
    %81 = vector.broadcast %cst_53 : f32 to vector<16x128xf32>
    %82 = arith.maximumf %80, %81 : vector<16x128xf32>
    %c0_54 = arith.constant 0 : index
    %c0_55 = arith.constant 0 : index
    %83 = vector.load %arg11[%c0_54, %c0_55] : memref<128x128xf32, #tpu.memory_space<vmem>>, vector<128x128xf32>
    %cst_56 = arith.constant dense<0.000000e+00> : vector<16x128xf32>
    %84 = tpu.matmul %82, %83, %cst_56 {dimension_numbers = #tpu.dot_dimension_numbers<[1], [0], [0], [1], [0, 0, 1, 1], [], []>} : vector<16x128xf32>, vector<128x128xf32>, vector<16x128xf32> -> vector<16x128xf32>
    %c0_57 = arith.constant 0 : index
    %c0_58 = arith.constant 0 : index
    %85 = vector.load %arg12[%c0_57, %c0_58] : memref<1x128xf32, #tpu.memory_space<vmem>>, vector<1x128xf32>
    %86 = vector.broadcast %85 : vector<1x128xf32> to vector<16x128xf32>
    %87 = arith.addf %84, %86 : vector<16x128xf32>
    %c0_59 = arith.constant 0 : index
    %c0_60 = arith.constant 0 : index
    %88 = vector.load %arg13[%c0_59, %c0_60] : memref<16x128xf32, #tpu.memory_space<vmem>>, vector<16x128xf32>
    tpu.vector_store %arg13[%c0_59, %c0_60], %87 {strides = array<i32>} : memref<16x128xf32, #tpu.memory_space<vmem>>, vector<16x128xf32>,
    return
  }
}

</mosaic_0001>

<llo_original>
// kernel: psi_forward.1
$region0: #{psi_forward.1}
  #allocation0 [shape = 'u32[]', space=smem, size = 0x4, offset = 0x4, fixed_abs, tag = 'smem constant byte address 0x4 - core index']
  #allocation1 [shape = 'u32[144,128]{1,0:T(1,128)}', space=vmem, size = 0x12000, scoped, tag = 'internal scratch']
  #allocation2 [shape = 'f32[16,64]{1,0:T(8,128)}', space=vmem, size = 0x2000, scoped, tag = 'scratch operand']
  %s0 = inlined_call_operand.vmem [shape: f32[16,256], index: 0, kind: input, shape index: {}]
  %s1 = inlined_call_operand.vmem [shape: f32[6,16,8], index: 1, kind: input, shape index: {}]
  %s2 = inlined_call_operand.vmem [shape: f32[256,32], index: 2, kind: input, shape index: {}]
  %s3 = inlined_call_operand.vmem [shape: f32[1,32], index: 3, kind: input, shape index: {}]
  %s4 = inlined_call_operand.vmem [shape: f32[8,32], index: 4, kind: input, shape index: {}]
  %s5 = inlined_call_operand.vmem [shape: f32[32,32], index: 5, kind: input, shape index: {}]
  %s6 = inlined_call_operand.vmem [shape: f32[1,32], index: 6, kind: input, shape index: {}]
  %s7 = inlined_call_operand.vmem [shape: f32[64,128], index: 7, kind: input, shape index: {}]
  %s8 = inlined_call_operand.vmem [shape: f32[1,128], index: 8, kind: input, shape index: {}]
  %s9 = inlined_call_operand.vmem [shape: f32[128,128], index: 9, kind: input, shape index: {}]
  %s10 = inlined_call_operand.vmem [shape: f32[1,128], index: 10, kind: input, shape index: {}]
  %s11 = inlined_call_operand.vmem [shape: f32[128,128], index: 11, kind: input, shape index: {}]
  %s12 = inlined_call_operand.vmem [shape: f32[1,128], index: 12, kind: input, shape index: {}]
  %s13 = inlined_call_operand.hbm [shape: f32[16,128], index: 13, kind: output, shape index: {}]
  %s14 = sld [smem:[#allocation0]]
  $region62: #{psi_forward.1} parent=0
    _
  %s16 = ssub.s32 1, %s14
  %s17 = scalar_select 0, %s16, %s14
  $region1: #{psi_forward.1} parent=0
    #allocation3 [shape = 'u8[8192]{0}', space=vmem, size = 0x2000, scoped, tag = 'output window, operand 0, single buffered']
    #allocation4 [shape = 's32[1]{0}', space=sflag, size = 0x4, scoped, tag = 'scoped memory for psi_forward.1']
    %18 = vsyncpa [#allocation4], 0
    // Predicated region
    $region2: #{psi_forward.1} parent=1 // pred_check
      _
    $region3: #{psi_forward.1} parent=1 // pred_check_branch
      %20 = sbr.rel (0) target = $region5
    $region4: #{psi_forward.1} parent=1 // pred_region
      _
    $region5: #{psi_forward.1} parent=1 // pred_fallthru
      _
    // Predicated region
    $region6: #{psi_forward.1} parent=1 // pred_check
      _
    $region7: #{psi_forward.1} parent=1 // pred_check_branch
      %22 = sbr.rel (0) target = $region9
    $region8: #{psi_forward.1} parent=1 // pred_region
      _
    $region9: #{psi_forward.1} parent=1 // pred_fallthru
      _
    // Predicated region
    $region10: #{psi_forward.1} parent=1 // pred_check
      _
    $region11: #{psi_forward.1} parent=1 // pred_check_branch
      %24 = sbr.rel (0) target = $region13
    $region12: #{psi_forward.1} parent=1 // pred_region
      _
    $region13: #{psi_forward.1} parent=1 // pred_fallthru
      _
    // Predicated region
    $region14: #{psi_forward.1} parent=1 // pred_check
      _
    $region15: #{psi_forward.1} parent=1 // pred_check_branch
      %26 = sbr.rel (0) target = $region17
    $region16: #{psi_forward.1} parent=1 // pred_region
      _
    $region17: #{psi_forward.1} parent=1 // pred_fallthru
      _
    // Predicated region
    $region18: #{psi_forward.1} parent=1 // pred_check
      _
    $region19: #{psi_forward.1} parent=1 // pred_check_branch
      %28 = sbr.rel (0) target = $region21
    $region20: #{psi_forward.1} parent=1 // pred_region
      _
    $region21: #{psi_forward.1} parent=1 // pred_fallthru
      _
    // Predicated region
    $region22: #{psi_forward.1} parent=1 // pred_check
      _
    $region23: #{psi_forward.1} parent=1 // pred_check_branch
      %30 = sbr.rel (0) target = $region25
    $region24: #{psi_forward.1} parent=1 // pred_region
      _
    $region25: #{psi_forward.1} parent=1 // pred_fallthru
      _
    // Predicated region
    $region26: #{psi_forward.1} parent=1 // pred_check
      _
    $region27: #{psi_forward.1} parent=1 // pred_check_branch
      %32 = sbr.rel (0) target = $region29
    $region28: #{psi_forward.1} parent=1 // pred_region
      _
    $region29: #{psi_forward.1} parent=1 // pred_fallthru
      _
    // Predicated region
    $region30: #{psi_forward.1} parent=1 // pred_check
      _
    $region31: #{psi_forward.1} parent=1 // pred_check_branch
      %34 = sbr.rel (0) target = $region33
    $region32: #{psi_forward.1} parent=1 // pred_region
      _
    $region33: #{psi_forward.1} parent=1 // pred_fallthru
      _
    // Predicated region
    $region34: #{psi_forward.1} parent=1 // pred_check
      _
    $region35: #{psi_forward.1} parent=1 // pred_check_branch
      %36 = sbr.rel (0) target = $region37
    $region36: #{psi_forward.1} parent=1 // pred_region
      _
    $region37: #{psi_forward.1} parent=1 // pred_fallthru
      _
    // Predicated region
    $region38: #{psi_forward.1} parent=1 // pred_check
      _
    $region39: #{psi_forward.1} parent=1 // pred_check_branch
      %38 = sbr.rel (0) target = $region41
    $region40: #{psi_forward.1} parent=1 // pred_region
      _
    $region41: #{psi_forward.1} parent=1 // pred_fallthru
      _
    // Predicated region
    $region42: #{psi_forward.1} parent=1 // pred_check
      _
    $region43: #{psi_forward.1} parent=1 // pred_check_branch
      %40 = sbr.rel (0) target = $region45
    $region44: #{psi_forward.1} parent=1 // pred_region
      _
    $region45: #{psi_forward.1} parent=1 // pred_fallthru
      _
    // Predicated region
    $region46: #{psi_forward.1} parent=1 // pred_check
      _
    $region47: #{psi_forward.1} parent=1 // pred_check_branch
      %42 = sbr.rel (0) target = $region49
    $region48: #{psi_forward.1} parent=1 // pred_region
      _
    $region49: #{psi_forward.1} parent=1 // pred_fallthru
      _
    // Predicated region
    $region50: #{psi_forward.1} parent=1 // pred_check
      _
    $region51: #{psi_forward.1} parent=1 // pred_check_branch
      %44 = sbr.rel (0) target = $region53
    $region52: #{psi_forward.1} parent=1 // pred_region
      _
    $region53: #{psi_forward.1} parent=1 // pred_fallthru
      _
    %v45 = vld [vmem:[%s0] sm:$0xff]
    %v46 = vld [vmem:[%s0 + $0x8] sm:$0xff]
    %v47 = vld [vmem:[%s0 + $0x10] sm:$0xff]
    %v48 = vld [vmem:[%s0 + $0x18] sm:$0xff]
    %v49 = vld [vmem:[%s2] sm:$0xff]
    %v50 = vld [vmem:[%s2 + $0x8] sm:$0xff]
    %v51 = vld [vmem:[%s2 + $0x10] sm:$0xff]
    %v52 = vld [vmem:[%s2 + $0x18] sm:$0xff]
    %v53 = vld [vmem:[%s2 + $0x20] sm:$0xff]
    %v54 = vld [vmem:[%s2 + $0x28] sm:$0xff]
    %v55 = vld [vmem:[%s2 + $0x30] sm:$0xff]
    %v56 = vld [vmem:[%s2 + $0x38] sm:$0xff]
    %v57 = vld [vmem:[%s2 + $0x40] sm:$0xff]
    %v58 = vld [vmem:[%s2 + $0x48] sm:$0xff]
    %v59 = vld [vmem:[%s2 + $0x50] sm:$0xff]
    %v60 = vld [vmem:[%s2 + $0x58] sm:$0xff]
    %v61 = vld [vmem:[%s2 + $0x60] sm:$0xff]
    %v62 = vld [vmem:[%s2 + $0x68] sm:$0xff]
    %v63 = vld [vmem:[%s2 + $0x70] sm:$0xff]
    %v64 = vld [vmem:[%s2 + $0x78] sm:$0xff]
    %v65 = vld [vmem:[%s2 + $0x80] sm:$0xff]
    %v66 = vld [vmem:[%s2 + $0x88] sm:$0xff]
    %v67 = vld [vmem:[%s2 + $0x90] sm:$0xff]
    %v68 = vld [vmem:[%s2 + $0x98] sm:$0xff]
    %v69 = vld [vmem:[%s2 + $0xa0] sm:$0xff]
    %v70 = vld [vmem:[%s2 + $0xa8] sm:$0xff]
    %v71 = vld [vmem:[%s2 + $0xb0] sm:$0xff]
    %v72 = vld [vmem:[%s2 + $0xb8] sm:$0xff]
    %v73 = vld [vmem:[%s2 + $0xc0] sm:$0xff]
    %v74 = vld [vmem:[%s2 + $0xc8] sm:$0xff]
    %v75 = vld [vmem:[%s2 + $0xd0] sm:$0xff]
    %v76 = vld [vmem:[%s2 + $0xd8] sm:$0xff]
    %v77 = vld [vmem:[%s2 + $0xe0] sm:$0xff]
    %v78 = vld [vmem:[%s2 + $0xe8] sm:$0xff]
    %v79 = vld [vmem:[%s2 + $0xf0] sm:$0xff]
    %v80 = vld [vmem:[%s2 + $0xf8] sm:$0xff]
    %v81 = vld [vmem:[%s3] sm:$0x1]
    %v83 = vlaneseq
    %v84 = vshrl.u32 %v83, 7
    %v85 = vsub.s32 0, %v84
    %v86 = vrot.slane %v81, %v85
    %88 = vmatprep.subr.mxu0 0.0
    %89 = vmatpush1.msra.mxu0 %v64
    %90 = vmatprep.subr.mxu0 0.0
    %91 = vmatpush1.msra.mxu0 %v63
    %92 = vmatprep.subr.mxu0 0.0
    %93 = vmatpush1.msra.mxu0 %v62
    %94 = vmatprep.subr.mxu0 0.0
    %95 = vmatpush1.msra.mxu0 %v61
    %96 = vmatprep.subr.mxu0 0.0
    %97 = vmatpush1.msra.mxu0 %v60
    %98 = vmatprep.subr.mxu0 0.0
    %99 = vmatpush1.msra.mxu0 %v59
    %100 = vmatprep.subr.mxu0 0.0
    %101 = vmatpush1.msra.mxu0 %v58
    %102 = vmatprep.subr.mxu0 0.0
    %103 = vmatpush1.msra.mxu0 %v57
    %104 = vmatprep.subr.mxu0 0.0
    %105 = vmatpush1.msra.mxu0 %v56
    %106 = vmatprep.subr.mxu0 0.0
    %107 = vmatpush1.msra.mxu0 %v55
    %108 = vmatprep.subr.mxu0 0.0
    %109 = vmatpush1.msra.mxu0 %v54
    %110 = vmatprep.subr.mxu0 0.0
    %111 = vmatpush1.msra.mxu0 %v53
    %112 = vmatprep.subr.mxu0 0.0
    %113 = vmatpush1.msra.mxu0 %v52
    %114 = vmatprep.subr.mxu0 0.0
    %115 = vmatpush1.msra.mxu0 %v51
    %116 = vmatprep.subr.mxu0 0.0
    %117 = vmatpush1.msra.mxu0 %v50
    %118 = vmatprep.subr.mxu0 0.0
    %119 = vmatpush1.msra.mxu0 %v49
    %120 = vmatprep.subr.mxu0 0.0
    %121 = vmatpush2.msra.mxu0 %v80
    %122 = vmatprep.subr.mxu0 0.0
    %123 = vmatpush2.msra.mxu0 %v79
    %124 = vmatprep.subr.mxu0 0.0
    %125 = vmatpush2.msra.mxu0 %v78
    %126 = vmatprep.subr.mxu0 0.0
    %127 = vmatpush2.msra.mxu0 %v77
    %128 = vmatprep.subr.mxu0 0.0
    %129 = vmatpush2.msra.mxu0 %v76
    %130 = vmatprep.subr.mxu0 0.0
    %131 = vmatpush2.msra.mxu0 %v75
    %132 = vmatprep.subr.mxu0 0.0
    %133 = vmatpush2.msra.mxu0 %v74
    %134 = vmatprep.subr.mxu0 0.0
    %135 = vmatpush2.msra.mxu0 %v73
    %136 = vmatprep.subr.mxu0 0.0
    %137 = vmatpush2.msra.mxu0 %v72
    %138 = vmatprep.subr.mxu0 0.0
    %139 = vmatpush2.msra.mxu0 %v71
    %140 = vmatprep.subr.mxu0 0.0
    %141 = vmatpush2.msra.mxu0 %v70
    %142 = vmatprep.subr.mxu0 0.0
    %143 = vmatpush2.msra.mxu0 %v69
    %144 = vmatprep.subr.mxu0 0.0
    %145 = vmatpush2.msra.mxu0 %v68
    %146 = vmatprep.subr.mxu0 0.0
    %147 = vmatpush2.msra.mxu0 %v67
    %148 = vmatprep.subr.mxu0 0.0
    %149 = vmatpush2.msra.mxu0 %v66
    %150 = vmatprep.subr.mxu0 0.0
    %151 = vmatpush2.msra.mxu0 %v65
    %152 = vmatprep.mubr.f32.mxu0 %v46
    %153 = vmatmul.mubr.f32.gmra.mxu0 %v45
    %v154 = vpop.f32.mrf.mxu0
    %v155 = vadd.f32 %v86, %v154
    %v156 = vpop.f32.mrf.mxu0
    %157 = vmatprep.mubr.f32.mxu0 %v48
    %158 = vmatmul.mubr.f32.gmra.mxu0 %v47
    %v159 = vpop.f32.mrf.mxu0
    %v160 = vadd.f32 %v86, %v159
    %v161 = vpop.f32.mrf.mxu0
    %162 = vdwg.mxu0
    %v163 = vld [vmem:[%s4] sm:$0xff]
    %v164 = vld [vmem:[%s5] sm:$0xff]
    %v165 = vld [vmem:[%s5 + $0x8] sm:$0xff]
    %v166 = vld [vmem:[%s5 + $0x10] sm:$0xff]
    %v167 = vld [vmem:[%s5 + $0x18] sm:$0xff]
    %v168 = vld [vmem:[%s6] sm:$0x1]
    %v169 = vld [vmem:[%s1] sm:$0xff]
    %v170 = vld [vmem:[%s1 + $0x8] sm:$0xff]
    %vm171 = vcmask 261120
    %v173 = vsel %vm171, 0.0, 0
    %175 = vmatprep.subr.mxu0 0.0
    %176 = vmatpush1.msra.mxu0 0.0
    %177 = vmatprep.subr.mxu0 0.0
    %178 = vmatpush1.msra.mxu0 0.0
    %179 = vmatprep.subr.mxu0 0.0
    %180 = vmatpush1.msra.mxu0 0.0
    %181 = vmatprep.subr.mxu0 0.0
    %182 = vmatpush1.msra.mxu0 0.0
    %183 = vmatprep.subr.mxu0 0.0
    %184 = vmatpush1.msra.mxu0 0.0
    %185 = vmatprep.subr.mxu0 0.0
    %186 = vmatpush1.msra.mxu0 0.0
    %187 = vmatprep.subr.mxu0 0.0
    %188 = vmatpush1.msra.mxu0 0.0
    %189 = vmatprep.subr.mxu0 0.0
    %190 = vmatpush1.msra.mxu0 0.0
    %191 = vmatprep.subr.mxu0 0.0
    %192 = vmatpush1.msra.mxu0 0.0
    %193 = vmatprep.subr.mxu0 0.0
    %194 = vmatpush1.msra.mxu0 0.0
    %195 = vmatprep.subr.mxu0 0.0
    %196 = vmatpush1.msra.mxu0 0.0
    %197 = vmatprep.subr.mxu0 0.0
    %198 = vmatpush1.msra.mxu0 0.0
    %199 = vmatprep.subr.mxu0 0.0
    %200 = vmatpush1.msra.mxu0 %v167
    %201 = vmatprep.subr.mxu0 0.0
    %202 = vmatpush1.msra.mxu0 %v166
    %203 = vmatprep.subr.mxu0 0.0
    %204 = vmatpush1.msra.mxu0 %v165
    %205 = vmatprep.subr.mxu0 0.0
    %206 = vmatpush1.msra.mxu0 %v164
    %207 = vmatprep.subr.mxu0 0.0
    %208 = vmatpush2.msra.mxu0 0.0
    %209 = vmatprep.subr.mxu0 0.0
    %210 = vmatpush2.msra.mxu0 0.0
    %211 = vmatprep.subr.mxu0 0.0
    %212 = vmatpush2.msra.mxu0 0.0
    %213 = vmatprep.subr.mxu0 0.0
    %214 = vmatpush2.msra.mxu0 0.0
    %215 = vmatprep.subr.mxu0 0.0
    %216 = vmatpush2.msra.mxu0 0.0
    %217 = vmatprep.subr.mxu0 0.0
    %218 = vmatpush2.msra.mxu0 0.0
    %219 = vmatprep.subr.mxu0 0.0
    %220 = vmatpush2.msra.mxu0 0.0
    %221 = vmatprep.subr.mxu0 0.0
    %222 = vmatpush2.msra.mxu0 0.0
    %223 = vmatprep.subr.mxu0 0.0
    %224 = vmatpush2.msra.mxu0 0.0
    %225 = vmatprep.subr.mxu0 0.0
    %226 = vmatpush2.msra.mxu0 0.0
    %227 = vmatprep.subr.mxu0 0.0
    %228 = vmatpush2.msra.mxu0 0.0
    %229 = vmatprep.subr.mxu0 0.0
    %230 = vmatpush2.msra.mxu0 0.0
    %231 = vmatprep.subr.mxu0 0.0
    %232 = vmatpush2.msra.mxu0 0.0
    %233 = vmatprep.subr.mxu0 0.0
    %234 = vmatpush2.msra.mxu0 0.0
    %235 = vmatprep.subr.mxu0 0.0
    %236 = vmatpush2.msra.mxu0 0.0
    %237 = vmatprep.subr.mxu0 0.0
    %238 = vmatpush2.msra.mxu0 0.0
    %239 = vmatprep.mubr.f32.mxu0 0.0
    %240 = vmatmul.mubr.f32.gmra.mxu0 %v173
    %v241 = vpop.f32.mrf.mxu0
    %v242 = vadd.f32 0.0, %v241
    %v243 = vpop.f32.mrf.mxu0
    %244 = vmatprep.mubr.f32.mxu0 0.0
    %245 = vmatmul.mubr.f32.gmra.mxu0 %v173
    %v246 = vpop.f32.mrf.mxu0
    %v247 = vadd.f32 0.0, %v246
    %v248 = vpop.f32.mrf.mxu0
    %249 = vdwg.mxu0
    %vm250 = vcmask 64512
    %v252 = vsel %vm250, %v169, 0
    %v255 = vsel %vm250, %v170, 0
    %257 = vmatprep.subr.mxu0 0.0
    %258 = vmatpush1.msra.mxu0 0.0
    %259 = vmatprep.subr.mxu0 0.0
    %260 = vmatpush1.msra.mxu0 0.0
    %261 = vmatprep.subr.mxu0 0.0
    %262 = vmatpush1.msra.mxu0 0.0
    %263 = vmatprep.subr.mxu0 0.0
    %264 = vmatpush1.msra.mxu0 0.0
    %265 = vmatprep.subr.mxu0 0.0
    %266 = vmatpush1.msra.mxu0 0.0
    %267 = vmatprep.subr.mxu0 0.0
    %268 = vmatpush1.msra.mxu0 0.0
    %269 = vmatprep.subr.mxu0 0.0
    %270 = vmatpush1.msra.mxu0 0.0
    %271 = vmatprep.subr.mxu0 0.0
    %272 = vmatpush1.msra.mxu0 0.0
    %273 = vmatprep.subr.mxu0 0.0
    %274 = vmatpush1.msra.mxu0 0.0
    %275 = vmatprep.subr.mxu0 0.0
    %276 = vmatpush1.msra.mxu0 0.0
    %277 = vmatprep.subr.mxu0 0.0
    %278 = vmatpush1.msra.mxu0 0.0
    %279 = vmatprep.subr.mxu0 0.0
    %280 = vmatpush1.msra.mxu0 0.0
    %281 = vmatprep.subr.mxu0 0.0
    %282 = vmatpush1.msra.mxu0 0.0
    %283 = vmatprep.subr.mxu0 0.0
    %284 = vmatpush1.msra.mxu0 0.0
    %285 = vmatprep.subr.mxu0 0.0
    %286 = vmatpush1.msra.mxu0 0.0
    %287 = vmatprep.subr.mxu0 0.0
    %288 = vmatpush1.msra.mxu0 %v163
    %289 = vmatprep.subr.mxu0 0.0
    %290 = vmatpush2.msra.mxu0 0.0
    %291 = vmatprep.subr.mxu0 0.0
    %292 = vmatpush2.msra.mxu0 0.0
    %293 = vmatprep.subr.mxu0 0.0
    %294 = vmatpush2.msra.mxu0 0.0
    %295 = vmatprep.subr.mxu0 0.0
    %296 = vmatpush2.msra.mxu0 0.0
    %297 = vmatprep.subr.mxu0 0.0
    %298 = vmatpush2.msra.mxu0 0.0
    %299 = vmatprep.subr.mxu0 0.0
    %300 = vmatpush2.msra.mxu0 0.0
    %301 = vmatprep.subr.mxu0 0.0
    %302 = vmatpush2.msra.mxu0 0.0
    %303 = vmatprep.subr.mxu0 0.0
    %304 = vmatpush2.msra.mxu0 0.0
    %305 = vmatprep.subr.mxu0 0.0
    %306 = vmatpush2.msra.mxu0 0.0
    %307 = vmatprep.subr.mxu0 0.0
    %308 = vmatpush2.msra.mxu0 0.0
    %309 = vmatprep.subr.mxu0 0.0
    %310 = vmatpush2.msra.mxu0 0.0
    %311 = vmatprep.subr.mxu0 0.0
    %312 = vmatpush2.msra.mxu0 0.0
    %313 = vmatprep.subr.mxu0 0.0
    %314 = vmatpush2.msra.mxu0 0.0
    %315 = vmatprep.subr.mxu0 0.0
    %316 = vmatpush2.msra.mxu0 0.0
    %317 = vmatprep.subr.mxu0 0.0
    %318 = vmatpush2.msra.mxu0 0.0
    %319 = vmatprep.subr.mxu0 0.0
    %320 = vmatpush2.msra.mxu0 0.0
    %321 = vmatprep.mubr.f32.mxu0 0.0
    %322 = vmatmul.mubr.f32.gmra.mxu0 %v252
    %v323 = vpop.f32.mrf.mxu0
    %v324 = vadd.f32 %v242, %v323
    %v325 = vpop.f32.mrf.mxu0
    %326 = vmatprep.mubr.f32.mxu0 0.0
    %327 = vmatmul.mubr.f32.gmra.mxu0 %v255
    %v328 = vpop.f32.mrf.mxu0
    %v329 = vadd.f32 %v247, %v328
    %v330 = vpop.f32.mrf.mxu0
    %331 = vdwg.mxu0
    %v333 = vlaneseq
    %v334 = vshrl.u32 %v333, 7
    %v335 = vsub.s32 0, %v334
    %v336 = vrot.slane %v168, %v335
    %v338 = vadd.f32 %v324, %v336
    %v339 = vadd.f32 %v329, %v336
    %v340 = vtanh.pop %v338
    %v341 = vtanh.pop %v339
    %s342 = scalar_lea.vmem %s1, 16
    %v343 = vld [vmem:[%s342] sm:$0xff]
    %v344 = vld [vmem:[%s342 + $0x8] sm:$0xff]
    %v346 = vsel %vm171, %v340, 0
    %v349 = vsel %vm171, %v341, 0
    %351 = vmatprep.subr.mxu0 0.0
    %352 = vmatpush1.msra.mxu0 0.0
    %353 = vmatprep.subr.mxu0 0.0
    %354 = vmatpush1.msra.mxu0 0.0
    %355 = vmatprep.subr.mxu0 0.0
    %356 = vmatpush1.msra.mxu0 0.0
    %357 = vmatprep.subr.mxu0 0.0
    %358 = vmatpush1.msra.mxu0 0.0
    %359 = vmatprep.subr.mxu0 0.0
    %360 = vmatpush1.msra.mxu0 0.0
    %361 = vmatprep.subr.mxu0 0.0
    %362 = vmatpush1.msra.mxu0 0.0
    %363 = vmatprep.subr.mxu0 0.0
    %364 = vmatpush1.msra.mxu0 0.0
    %365 = vmatprep.subr.mxu0 0.0
    %366 = vmatpush1.msra.mxu0 0.0
    %367 = vmatprep.subr.mxu0 0.0
    %368 = vmatpush1.msra.mxu0 0.0
    %369 = vmatprep.subr.mxu0 0.0
    %370 = vmatpush1.msra.mxu0 0.0
    %371 = vmatprep.subr.mxu0 0.0
    %372 = vmatpush1.msra.mxu0 0.0
    %373 = vmatprep.subr.mxu0 0.0
    %374 = vmatpush1.msra.mxu0 0.0
    %375 = vmatprep.subr.mxu0 0.0
    %376 = vmatpush1.msra.mxu0 %v167
    %377 = vmatprep.subr.mxu0 0.0
    %378 = vmatpush1.msra.mxu0 %v166
    %379 = vmatprep.subr.mxu0 0.0
    %380 = vmatpush1.msra.mxu0 %v165
    %381 = vmatprep.subr.mxu0 0.0
    %382 = vmatpush1.msra.mxu0 %v164
    %383 = vmatprep.subr.mxu0 0.0
    %384 = vmatpush2.msra.mxu0 0.0
    %385 = vmatprep.subr.mxu0 0.0
    %386 = vmatpush2.msra.mxu0 0.0
    %387 = vmatprep.subr.mxu0 0.0
    %388 = vmatpush2.msra.mxu0 0.0
    %389 = vmatprep.subr.mxu0 0.0
    %390 = vmatpush2.msra.mxu0 0.0
    %391 = vmatprep.subr.mxu0 0.0
    %392 = vmatpush2.msra.mxu0 0.0
    %393 = vmatprep.subr.mxu0 0.0
    %394 = vmatpush2.msra.mxu0 0.0
    %395 = vmatprep.subr.mxu0 0.0
    %396 = vmatpush2.msra.mxu0 0.0
    %397 = vmatprep.subr.mxu0 0.0
    %398 = vmatpush2.msra.mxu0 0.0
    %399 = vmatprep.subr.mxu0 0.0
    %400 = vmatpush2.msra.mxu0 0.0
    %401 = vmatprep.subr.mxu0 0.0
    %402 = vmatpush2.msra.mxu0 0.0
    %403 = vmatprep.subr.mxu0 0.0
    %404 = vmatpush2.msra.mxu0 0.0
    %405 = vmatprep.subr.mxu0 0.0
    %406 = vmatpush2.msra.mxu0 0.0
    %407 = vmatprep.subr.mxu0 0.0
    %408 = vmatpush2.msra.mxu0 0.0
    %409 = vmatprep.subr.mxu0 0.0
    %410 = vmatpush2.msra.mxu0 0.0
    %411 = vmatprep.subr.mxu0 0.0
    %412 = vmatpush2.msra.mxu0 0.0
    %413 = vmatprep.subr.mxu0 0.0
    %414 = vmatpush2.msra.mxu0 0.0
    %415 = vmatprep.mubr.f32.mxu0 0.0
    %416 = vmatmul.mubr.f32.gmra.mxu0 %v346
    %v417 = vpop.f32.mrf.mxu0
    %v418 = vadd.f32 0.0, %v417
    %v419 = vpop.f32.mrf.mxu0
    %420 = vmatprep.mubr.f32.mxu0 0.0
    %421 = vmatmul.mubr.f32.gmra.mxu0 %v349
    %v422 = vpop.f32.mrf.mxu0
    %v423 = vadd.f32 0.0, %v422
    %v424 = vpop.f32.mrf.mxu0
    %425 = vdwg.mxu0
    %v427 = vsel %vm250, %v343, 0
    %v430 = vsel %vm250, %v344, 0
    %432 = vmatprep.subr.mxu0 0.0
    %433 = vmatpush1.msra.mxu0 0.0
    %434 = vmatprep.subr.mxu0 0.0
    %435 = vmatpush1.msra.mxu0 0.0
    %436 = vmatprep.subr.mxu0 0.0
    %437 = vmatpush1.msra.mxu0 0.0
    %438 = vmatprep.subr.mxu0 0.0
    %439 = vmatpush1.msra.mxu0 0.0
    %440 = vmatprep.subr.mxu0 0.0
    %441 = vmatpush1.msra.mxu0 0.0
    %442 = vmatprep.subr.mxu0 0.0
    %443 = vmatpush1.msra.mxu0 0.0
    %444 = vmatprep.subr.mxu0 0.0
    %445 = vmatpush1.msra.mxu0 0.0
    %446 = vmatprep.subr.mxu0 0.0
    %447 = vmatpush1.msra.mxu0 0.0
    %448 = vmatprep.subr.mxu0 0.0
    %449 = vmatpush1.msra.mxu0 0.0
    %450 = vmatprep.subr.mxu0 0.0
    %451 = vmatpush1.msra.mxu0 0.0
    %452 = vmatprep.subr.mxu0 0.0
    %453 = vmatpush1.msra.mxu0 0.0
    %454 = vmatprep.subr.mxu0 0.0
    %455 = vmatpush1.msra.mxu0 0.0
    %456 = vmatprep.subr.mxu0 0.0
    %457 = vmatpush1.msra.mxu0 0.0
    %458 = vmatprep.subr.mxu0 0.0
    %459 = vmatpush1.msra.mxu0 0.0
    %460 = vmatprep.subr.mxu0 0.0
    %461 = vmatpush1.msra.mxu0 0.0
    %462 = vmatprep.subr.mxu0 0.0
    %463 = vmatpush1.msra.mxu0 %v163
    %464 = vmatprep.subr.mxu0 0.0
    %465 = vmatpush2.msra.mxu0 0.0
    %466 = vmatprep.subr.mxu0 0.0
    %467 = vmatpush2.msra.mxu0 0.0
    %468 = vmatprep.subr.mxu0 0.0
    %469 = vmatpush2.msra.mxu0 0.0
    %470 = vmatprep.subr.mxu0 0.0
    %471 = vmatpush2.msra.mxu0 0.0
    %472 = vmatprep.subr.mxu0 0.0
    %473 = vmatpush2.msra.mxu0 0.0
    %474 = vmatprep.subr.mxu0 0.0
    %475 = vmatpush2.msra.mxu0 0.0
    %476 = vmatprep.subr.mxu0 0.0
    %477 = vmatpush2.msra.mxu0 0.0
    %478 = vmatprep.subr.mxu0 0.0
    %479 = vmatpush2.msra.mxu0 0.0
    %480 = vmatprep.subr.mxu0 0.0
    %481 = vmatpush2.msra.mxu0 0.0
    %482 = vmatprep.subr.mxu0 0.0
    %483 = vmatpush2.msra.mxu0 0.0
    %484 = vmatprep.subr.mxu0 0.0
    %485 = vmatpush2.msra.mxu0 0.0
    %486 = vmatprep.subr.mxu0 0.0
    %487 = vmatpush2.msra.mxu0 0.0
    %488 = vmatprep.subr.mxu0 0.0
    %489 = vmatpush2.msra.mxu0 0.0
    %490 = vmatprep.subr.mxu0 0.0
    %491 = vmatpush2.msra.mxu0 0.0
    %492 = vmatprep.subr.mxu0 0.0
    %493 = vmatpush2.msra.mxu0 0.0
    %494 = vmatprep.subr.mxu0 0.0
    %495 = vmatpush2.msra.mxu0 0.0
    %496 = vmatprep.mubr.f32.mxu0 0.0
    %497 = vmatmul.mubr.f32.gmra.mxu0 %v427
    %v498 = vpop.f32.mrf.mxu0
    %v499 = vadd.f32 %v418, %v498
    %v500 = vpop.f32.mrf.mxu0
    %501 = vmatprep.mubr.f32.mxu0 0.0
    %502 = vmatmul.mubr.f32.gmra.mxu0 %v430
    %v503 = vpop.f32.mrf.mxu0
    %v504 = vadd.f32 %v423, %v503
    %v505 = vpop.f32.mrf.mxu0
    %506 = vdwg.mxu0
    %v507 = vadd.f32 %v499, %v336
    %v508 = vadd.f32 %v504, %v336
    %v509 = vtanh.pop %v507
    %v510 = vtanh.pop %v508
    %s511 = scalar_lea.vmem %s1, 32
    %v512 = vld [vmem:[%s511] sm:$0xff]
    %v513 = vld [vmem:[%s511 + $0x8] sm:$0xff]
    %v515 = vsel %vm171, %v509, 0
    %v518 = vsel %vm171, %v510, 0
    %520 = vmatprep.subr.mxu0 0.0
    %521 = vmatpush1.msra.mxu0 0.0
    %522 = vmatprep.subr.mxu0 0.0
    %523 = vmatpush1.msra.mxu0 0.0
    %524 = vmatprep.subr.mxu0 0.0
    %525 = vmatpush1.msra.mxu0 0.0
    %526 = vmatprep.subr.mxu0 0.0
    %527 = vmatpush1.msra.mxu0 0.0
    %528 = vmatprep.subr.mxu0 0.0
    %529 = vmatpush1.msra.mxu0 0.0
    %530 = vmatprep.subr.mxu0 0.0
    %531 = vmatpush1.msra.mxu0 0.0
    %532 = vmatprep.subr.mxu0 0.0
    %533 = vmatpush1.msra.mxu0 0.0
    %534 = vmatprep.subr.mxu0 0.0
    %535 = vmatpush1.msra.mxu0 0.0
    %536 = vmatprep.subr.mxu0 0.0
    %537 = vmatpush1.msra.mxu0 0.0
    %538 = vmatprep.subr.mxu0 0.0
    %539 = vmatpush1.msra.mxu0 0.0
    %540 = vmatprep.subr.mxu0 0.0
    %541 = vmatpush1.msra.mxu0 0.0
    %542 = vmatprep.subr.mxu0 0.0
    %543 = vmatpush1.msra.mxu0 0.0
    %544 = vmatprep.subr.mxu0 0.0
    %545 = vmatpush1.msra.mxu0 %v167
    %546 = vmatprep.subr.mxu0 0.0
    %547 = vmatpush1.msra.mxu0 %v166
    %548 = vmatprep.subr.mxu0 0.0
    %549 = vmatpush1.msra.mxu0 %v165
    %550 = vmatprep.subr.mxu0 0.0
    %551 = vmatpush1.msra.mxu0 %v164
    %552 = vmatprep.subr.mxu0 0.0
    %553 = vmatpush2.msra.mxu0 0.0
    %554 = vmatprep.subr.mxu0 0.0
    %555 = vmatpush2.msra.mxu0 0.0
    %556 = vmatprep.subr.mxu0 0.0
    %557 = vmatpush2.msra.mxu0 0.0
    %558 = vmatprep.subr.mxu0 0.0
    %559 = vmatpush2.msra.mxu0 0.0
    %560 = vmatprep.subr.mxu0 0.0
    %561 = vmatpush2.msra.mxu0 0.0
    %562 = vmatprep.subr.mxu0 0.0
    %563 = vmatpush2.msra.mxu0 0.0
    %564 = vmatprep.subr.mxu0 0.0
    %565 = vmatpush2.msra.mxu0 0.0
    %566 = vmatprep.subr.mxu0 0.0
    %567 = vmatpush2.msra.mxu0 0.0
    %568 = vmatprep.subr.mxu0 0.0
    %569 = vmatpush2.msra.mxu0 0.0
    %570 = vmatprep.subr.mxu0 0.0
    %571 = vmatpush2.msra.mxu0 0.0
    %572 = vmatprep.subr.mxu0 0.0
    %573 = vmatpush2.msra.mxu0 0.0
    %574 = vmatprep.subr.mxu0 0.0
    %575 = vmatpush2.msra.mxu0 0.0
    %576 = vmatprep.subr.mxu0 0.0
    %577 = vmatpush2.msra.mxu0 0.0
    %578 = vmatprep.subr.mxu0 0.0
    %579 = vmatpush2.msra.mxu0 0.0
    %580 = vmatprep.subr.mxu0 0.0
    %581 = vmatpush2.msra.mxu0 0.0
    %582 = vmatprep.subr.mxu0 0.0
    %583 = vmatpush2.msra.mxu0 0.0
    %584 = vmatprep.mubr.f32.mxu0 0.0
    %585 = vmatmul.mubr.f32.gmra.mxu0 %v515
    %v586 = vpop.f32.mrf.mxu0
    %v587 = vadd.f32 0.0, %v586
    %v588 = vpop.f32.mrf.mxu0
    %589 = vmatprep.mubr.f32.mxu0 0.0
    %590 = vmatmul.mubr.f32.gmra.mxu0 %v518
    %v591 = vpop.f32.mrf.mxu0
    %v592 = vadd.f32 0.0, %v591
    %v593 = vpop.f32.mrf.mxu0
    %594 = vdwg.mxu0
    %v596 = vsel %vm250, %v512, 0
    %v599 = vsel %vm250, %v513, 0
    %601 = vmatprep.subr.mxu0 0.0
    %602 = vmatpush1.msra.mxu0 0.0
    %603 = vmatprep.subr.mxu0 0.0
    %604 = vmatpush1.msra.mxu0 0.0
    %605 = vmatprep.subr.mxu0 0.0
    %606 = vmatpush1.msra.mxu0 0.0
    %607 = vmatprep.subr.mxu0 0.0
    %608 = vmatpush1.msra.mxu0 0.0
    %609 = vmatprep.subr.mxu0 0.0
    %610 = vmatpush1.msra.mxu0 0.0
    %611 = vmatprep.subr.mxu0 0.0
    %612 = vmatpush1.msra.mxu0 0.0
    %613 = vmatprep.subr.mxu0 0.0
    %614 = vmatpush1.msra.mxu0 0.0
    %615 = vmatprep.subr.mxu0 0.0
    %616 = vmatpush1.msra.mxu0 0.0
    %617 = vmatprep.subr.mxu0 0.0
    %618 = vmatpush1.msra.mxu0 0.0
    %619 = vmatprep.subr.mxu0 0.0
    %620 = vmatpush1.msra.mxu0 0.0
    %621 = vmatprep.subr.mxu0 0.0
    %622 = vmatpush1.msra.mxu0 0.0
    %623 = vmatprep.subr.mxu0 0.0
    %624 = vmatpush1.msra.mxu0 0.0
    %625 = vmatprep.subr.mxu0 0.0
    %626 = vmatpush1.msra.mxu0 0.0
    %627 = vmatprep.subr.mxu0 0.0
    %628 = vmatpush1.msra.mxu0 0.0
    %629 = vmatprep.subr.mxu0 0.0
    %630 = vmatpush1.msra.mxu0 0.0
    %631 = vmatprep.subr.mxu0 0.0
    %632 = vmatpush1.msra.mxu0 %v163
    %633 = vmatprep.subr.mxu0 0.0
    %634 = vmatpush2.msra.mxu0 0.0
    %635 = vmatprep.subr.mxu0 0.0
    %636 = vmatpush2.msra.mxu0 0.0
    %637 = vmatprep.subr.mxu0 0.0
    %638 = vmatpush2.msra.mxu0 0.0
    %639 = vmatprep.subr.mxu0 0.0
    %640 = vmatpush2.msra.mxu0 0.0
    %641 = vmatprep.subr.mxu0 0.0
    %642 = vmatpush2.msra.mxu0 0.0
    %643 = vmatprep.subr.mxu0 0.0
    %644 = vmatpush2.msra.mxu0 0.0
    %645 = vmatprep.subr.mxu0 0.0
    %646 = vmatpush2.msra.mxu0 0.0
    %647 = vmatprep.subr.mxu0 0.0
    %648 = vmatpush2.msra.mxu0 0.0
    %649 = vmatprep.subr.mxu0 0.0
    %650 = vmatpush2.msra.mxu0 0.0
    %651 = vmatprep.subr.mxu0 0.0
    %652 = vmatpush2.msra.mxu0 0.0
    %653 = vmatprep.subr.mxu0 0.0
    %654 = vmatpush2.msra.mxu0 0.0
    %655 = vmatprep.subr.mxu0 0.0
    %656 = vmatpush2.msra.mxu0 0.0
    %657 = vmatprep.subr.mxu0 0.0
    %658 = vmatpush2.msra.mxu0 0.0
    %659 = vmatprep.subr.mxu0 0.0
    %660 = vmatpush2.msra.mxu0 0.0
    %661 = vmatprep.subr.mxu0 0.0
    %662 = vmatpush2.msra.mxu0 0.0
    %663 = vmatprep.subr.mxu0 0.0
    %664 = vmatpush2.msra.mxu0 0.0
    %665 = vmatprep.mubr.f32.mxu0 0.0
    %666 = vmatmul.mubr.f32.gmra.mxu0 %v596
    %v667 = vpop.f32.mrf.mxu0
    %v668 = vadd.f32 %v587, %v667
    %v669 = vpop.f32.mrf.mxu0
    %670 = vmatprep.mubr.f32.mxu0 0.0
    %671 = vmatmul.mubr.f32.gmra.mxu0 %v599
    %v672 = vpop.f32.mrf.mxu0
    %v673 = vadd.f32 %v592, %v672
    %v674 = vpop.f32.mrf.mxu0
    %675 = vdwg.mxu0
    %v676 = vadd.f32 %v668, %v336
    %v677 = vadd.f32 %v673, %v336
    %v678 = vtanh.pop %v676
    %v679 = vtanh.pop %v677
    %s680 = scalar_lea.vmem %s1, 48
    %v681 = vld [vmem:[%s680] sm:$0xff]
    %v682 = vld [vmem:[%s680 + $0x8] sm:$0xff]
    %v684 = vsel %vm171, %v678, 0
    %v687 = vsel %vm171, %v679, 0
    %689 = vmatprep.subr.mxu0 0.0
    %690 = vmatpush1.msra.mxu0 0.0
    %691 = vmatprep.subr.mxu0 0.0
    %692 = vmatpush1.msra.mxu0 0.0
    %693 = vmatprep.subr.mxu0 0.0
    %694 = vmatpush1.msra.mxu0 0.0
    %695 = vmatprep.subr.mxu0 0.0
    %696 = vmatpush1.msra.mxu0 0.0
    %697 = vmatprep.subr.mxu0 0.0
    %698 = vmatpush1.msra.mxu0 0.0
    %699 = vmatprep.subr.mxu0 0.0
    %700 = vmatpush1.msra.mxu0 0.0
    %701 = vmatprep.subr.mxu0 0.0
    %702 = vmatpush1.msra.mxu0 0.0
    %703 = vmatprep.subr.mxu0 0.0
    %704 = vmatpush1.msra.mxu0 0.0
    %705 = vmatprep.subr.mxu0 0.0
    %706 = vmatpush1.msra.mxu0 0.0
    %707 = vmatprep.subr.mxu0 0.0
    %708 = vmatpush1.msra.mxu0 0.0
    %709 = vmatprep.subr.mxu0 0.0
    %710 = vmatpush1.msra.mxu0 0.0
    %711 = vmatprep.subr.mxu0 0.0
    %712 = vmatpush1.msra.mxu0 0.0
    %713 = vmatprep.subr.mxu0 0.0
    %714 = vmatpush1.msra.mxu0 %v167
    %715 = vmatprep.subr.mxu0 0.0
    %716 = vmatpush1.msra.mxu0 %v166
    %717 = vmatprep.subr.mxu0 0.0
    %718 = vmatpush1.msra.mxu0 %v165
    %719 = vmatprep.subr.mxu0 0.0
    %720 = vmatpush1.msra.mxu0 %v164
    %721 = vmatprep.subr.mxu0 0.0
    %722 = vmatpush2.msra.mxu0 0.0
    %723 = vmatprep.subr.mxu0 0.0
    %724 = vmatpush2.msra.mxu0 0.0
    %725 = vmatprep.subr.mxu0 0.0
    %726 = vmatpush2.msra.mxu0 0.0
    %727 = vmatprep.subr.mxu0 0.0
    %728 = vmatpush2.msra.mxu0 0.0
    %729 = vmatprep.subr.mxu0 0.0
    %730 = vmatpush2.msra.mxu0 0.0
    %731 = vmatprep.subr.mxu0 0.0
    %732 = vmatpush2.msra.mxu0 0.0
    %733 = vmatprep.subr.mxu0 0.0
    %734 = vmatpush2.msra.mxu0 0.0
    %735 = vmatprep.subr.mxu0 0.0
    %736 = vmatpush2.msra.mxu0 0.0
    %737 = vmatprep.subr.mxu0 0.0
    %738 = vmatpush2.msra.mxu0 0.0
    %739 = vmatprep.subr.mxu0 0.0
    %740 = vmatpush2.msra.mxu0 0.0
    %741 = vmatprep.subr.mxu0 0.0
    %742 = vmatpush2.msra.mxu0 0.0
    %743 = vmatprep.subr.mxu0 0.0
    %744 = vmatpush2.msra.mxu0 0.0
    %745 = vmatprep.subr.mxu0 0.0
    %746 = vmatpush2.msra.mxu0 0.0
    %747 = vmatprep.subr.mxu0 0.0
    %748 = vmatpush2.msra.mxu0 0.0
    %749 = vmatprep.subr.mxu0 0.0
    %750 = vmatpush2.msra.mxu0 0.0
    %751 = vmatprep.subr.mxu0 0.0
    %752 = vmatpush2.msra.mxu0 0.0
    %753 = vmatprep.mubr.f32.mxu0 0.0
    %754 = vmatmul.mubr.f32.gmra.mxu0 %v684
    %v755 = vpop.f32.mrf.mxu0
    %v756 = vadd.f32 0.0, %v755
    %v757 = vpop.f32.mrf.mxu0
    %758 = vmatprep.mubr.f32.mxu0 0.0
    %759 = vmatmul.mubr.f32.gmra.mxu0 %v687
    %v760 = vpop.f32.mrf.mxu0
    %v761 = vadd.f32 0.0, %v760
    %v762 = vpop.f32.mrf.mxu0
    %763 = vdwg.mxu0
    %v765 = vsel %vm250, %v681, 0
    %v768 = vsel %vm250, %v682, 0
    %770 = vmatprep.subr.mxu0 0.0
    %771 = vmatpush1.msra.mxu0 0.0
    %772 = vmatprep.subr.mxu0 0.0
    %773 = vmatpush1.msra.mxu0 0.0
    %774 = vmatprep.subr.mxu0 0.0
    %775 = vmatpush1.msra.mxu0 0.0
    %776 = vmatprep.subr.mxu0 0.0
    %777 = vmatpush1.msra.mxu0 0.0
    %778 = vmatprep.subr.mxu0 0.0
    %779 = vmatpush1.msra.mxu0 0.0
    %780 = vmatprep.subr.mxu0 0.0
    %781 = vmatpush1.msra.mxu0 0.0
    %782 = vmatprep.subr.mxu0 0.0
    %783 = vmatpush1.msra.mxu0 0.0
    %784 = vmatprep.subr.mxu0 0.0
    %785 = vmatpush1.msra.mxu0 0.0
    %786 = vmatprep.subr.mxu0 0.0
    %787 = vmatpush1.msra.mxu0 0.0
    %788 = vmatprep.subr.mxu0 0.0
    %789 = vmatpush1.msra.mxu0 0.0
    %790 = vmatprep.subr.mxu0 0.0
    %791 = vmatpush1.msra.mxu0 0.0
    %792 = vmatprep.subr.mxu0 0.0
    %793 = vmatpush1.msra.mxu0 0.0
    %794 = vmatprep.subr.mxu0 0.0
    %795 = vmatpush1.msra.mxu0 0.0
    %796 = vmatprep.subr.mxu0 0.0
    %797 = vmatpush1.msra.mxu0 0.0
    %798 = vmatprep.subr.mxu0 0.0
    %799 = vmatpush1.msra.mxu0 0.0
    %800 = vmatprep.subr.mxu0 0.0
    %801 = vmatpush1.msra.mxu0 %v163
    %802 = vmatprep.subr.mxu0 0.0
    %803 = vmatpush2.msra.mxu0 0.0
    %804 = vmatprep.subr.mxu0 0.0
    %805 = vmatpush2.msra.mxu0 0.0
    %806 = vmatprep.subr.mxu0 0.0
    %807 = vmatpush2.msra.mxu0 0.0
    %808 = vmatprep.subr.mxu0 0.0
    %809 = vmatpush2.msra.mxu0 0.0
    %810 = vmatprep.subr.mxu0 0.0
    %811 = vmatpush2.msra.mxu0 0.0
    %812 = vmatprep.subr.mxu0 0.0
    %813 = vmatpush2.msra.mxu0 0.0
    %814 = vmatprep.subr.mxu0 0.0
    %815 = vmatpush2.msra.mxu0 0.0
    %816 = vmatprep.subr.mxu0 0.0
    %817 = vmatpush2.msra.mxu0 0.0
    %818 = vmatprep.subr.mxu0 0.0
    %819 = vmatpush2.msra.mxu0 0.0
    %820 = vmatprep.subr.mxu0 0.0
    %821 = vmatpush2.msra.mxu0 0.0
    %822 = vmatprep.subr.mxu0 0.0
    %823 = vmatpush2.msra.mxu0 0.0
    %824 = vmatprep.subr.mxu0 0.0
    %825 = vmatpush2.msra.mxu0 0.0
    %826 = vmatprep.subr.mxu0 0.0
    %827 = vmatpush2.msra.mxu0 0.0
    %828 = vmatprep.subr.mxu0 0.0
    %829 = vmatpush2.msra.mxu0 0.0
    %830 = vmatprep.subr.mxu0 0.0
    %831 = vmatpush2.msra.mxu0 0.0
    %832 = vmatprep.subr.mxu0 0.0
    %833 = vmatpush2.msra.mxu0 0.0
    %834 = vmatprep.mubr.f32.mxu0 0.0
    %835 = vmatmul.mubr.f32.gmra.mxu0 %v765
    %v836 = vpop.f32.mrf.mxu0
    %v837 = vadd.f32 %v756, %v836
    %v838 = vpop.f32.mrf.mxu0
    %839 = vmatprep.mubr.f32.mxu0 0.0
    %840 = vmatmul.mubr.f32.gmra.mxu0 %v768
    %v841 = vpop.f32.mrf.mxu0
    %v842 = vadd.f32 %v761, %v841
    %v843 = vpop.f32.mrf.mxu0
    %844 = vdwg.mxu0
    %v845 = vadd.f32 %v837, %v336
    %v846 = vadd.f32 %v842, %v336
    %v847 = vtanh.pop %v845
    %v848 = vtanh.pop %v846
    %s849 = scalar_lea.vmem %s1, 64
    %v850 = vld [vmem:[%s849] sm:$0xff]
    %v851 = vld [vmem:[%s849 + $0x8] sm:$0xff]
    %v853 = vsel %vm171, %v847, 0
    %v856 = vsel %vm171, %v848, 0
    %858 = vmatprep.subr.mxu0 0.0
    %859 = vmatpush1.msra.mxu0 0.0
    %860 = vmatprep.subr.mxu0 0.0
    %861 = vmatpush1.msra.mxu0 0.0
    %862 = vmatprep.subr.mxu0 0.0
    %863 = vmatpush1.msra.mxu0 0.0
    %864 = vmatprep.subr.mxu0 0.0
    %865 = vmatpush1.msra.mxu0 0.0
    %866 = vmatprep.subr.mxu0 0.0
    %867 = vmatpush1.msra.mxu0 0.0
    %868 = vmatprep.subr.mxu0 0.0
    %869 = vmatpush1.msra.mxu0 0.0
    %870 = vmatprep.subr.mxu0 0.0
    %871 = vmatpush1.msra.mxu0 0.0
    %872 = vmatprep.subr.mxu0 0.0
    %873 = vmatpush1.msra.mxu0 0.0
    %874 = vmatprep.subr.mxu0 0.0
    %875 = vmatpush1.msra.mxu0 0.0
    %876 = vmatprep.subr.mxu0 0.0
    %877 = vmatpush1.msra.mxu0 0.0
    %878 = vmatprep.subr.mxu0 0.0
    %879 = vmatpush1.msra.mxu0 0.0
    %880 = vmatprep.subr.mxu0 0.0
    %881 = vmatpush1.msra.mxu0 0.0
    %882 = vmatprep.subr.mxu0 0.0
    %883 = vmatpush1.msra.mxu0 %v167
    %884 = vmatprep.subr.mxu0 0.0
    %885 = vmatpush1.msra.mxu0 %v166
    %886 = vmatprep.subr.mxu0 0.0
    %887 = vmatpush1.msra.mxu0 %v165
    %888 = vmatprep.subr.mxu0 0.0
    %889 = vmatpush1.msra.mxu0 %v164
    %890 = vmatprep.subr.mxu0 0.0
    %891 = vmatpush2.msra.mxu0 0.0
    %892 = vmatprep.subr.mxu0 0.0
    %893 = vmatpush2.msra.mxu0 0.0
    %894 = vmatprep.subr.mxu0 0.0
    %895 = vmatpush2.msra.mxu0 0.0
    %896 = vmatprep.subr.mxu0 0.0
    %897 = vmatpush2.msra.mxu0 0.0
    %898 = vmatprep.subr.mxu0 0.0
    %899 = vmatpush2.msra.mxu0 0.0
    %900 = vmatprep.subr.mxu0 0.0
    %901 = vmatpush2.msra.mxu0 0.0
    %902 = vmatprep.subr.mxu0 0.0
    %903 = vmatpush2.msra.mxu0 0.0
    %904 = vmatprep.subr.mxu0 0.0
    %905 = vmatpush2.msra.mxu0 0.0
    %906 = vmatprep.subr.mxu0 0.0
    %907 = vmatpush2.msra.mxu0 0.0
    %908 = vmatprep.subr.mxu0 0.0
    %909 = vmatpush2.msra.mxu0 0.0
    %910 = vmatprep.subr.mxu0 0.0
    %911 = vmatpush2.msra.mxu0 0.0
    %912 = vmatprep.subr.mxu0 0.0
    %913 = vmatpush2.msra.mxu0 0.0
    %914 = vmatprep.subr.mxu0 0.0
    %915 = vmatpush2.msra.mxu0 0.0
    %916 = vmatprep.subr.mxu0 0.0
    %917 = vmatpush2.msra.mxu0 0.0
    %918 = vmatprep.subr.mxu0 0.0
    %919 = vmatpush2.msra.mxu0 0.0
    %920 = vmatprep.subr.mxu0 0.0
    %921 = vmatpush2.msra.mxu0 0.0
    %922 = vmatprep.mubr.f32.mxu0 0.0
    %923 = vmatmul.mubr.f32.gmra.mxu0 %v853
    %v924 = vpop.f32.mrf.mxu0
    %v925 = vadd.f32 0.0, %v924
    %v926 = vpop.f32.mrf.mxu0
    %927 = vmatprep.mubr.f32.mxu0 0.0
    %928 = vmatmul.mubr.f32.gmra.mxu0 %v856
    %v929 = vpop.f32.mrf.mxu0
    %v930 = vadd.f32 0.0, %v929
    %v931 = vpop.f32.mrf.mxu0
    %932 = vdwg.mxu0
    %v934 = vsel %vm250, %v850, 0
    %v937 = vsel %vm250, %v851, 0
    %939 = vmatprep.subr.mxu0 0.0
    %940 = vmatpush1.msra.mxu0 0.0
    %941 = vmatprep.subr.mxu0 0.0
    %942 = vmatpush1.msra.mxu0 0.0
    %943 = vmatprep.subr.mxu0 0.0
    %944 = vmatpush1.msra.mxu0 0.0
    %945 = vmatprep.subr.mxu0 0.0
    %946 = vmatpush1.msra.mxu0 0.0
    %947 = vmatprep.subr.mxu0 0.0
    %948 = vmatpush1.msra.mxu0 0.0
    %949 = vmatprep.subr.mxu0 0.0
    %950 = vmatpush1.msra.mxu0 0.0
    %951 = vmatprep.subr.mxu0 0.0
    %952 = vmatpush1.msra.mxu0 0.0
    %953 = vmatprep.subr.mxu0 0.0
    %954 = vmatpush1.msra.mxu0 0.0
    %955 = vmatprep.subr.mxu0 0.0
    %956 = vmatpush1.msra.mxu0 0.0
    %957 = vmatprep.subr.mxu0 0.0
    %958 = vmatpush1.msra.mxu0 0.0
    %959 = vmatprep.subr.mxu0 0.0
    %960 = vmatpush1.msra.mxu0 0.0
    %961 = vmatprep.subr.mxu0 0.0
    %962 = vmatpush1.msra.mxu0 0.0
    %963 = vmatprep.subr.mxu0 0.0
    %964 = vmatpush1.msra.mxu0 0.0
    %965 = vmatprep.subr.mxu0 0.0
    %966 = vmatpush1.msra.mxu0 0.0
    %967 = vmatprep.subr.mxu0 0.0
    %968 = vmatpush1.msra.mxu0 0.0
    %969 = vmatprep.subr.mxu0 0.0
    %970 = vmatpush1.msra.mxu0 %v163
    %971 = vmatprep.subr.mxu0 0.0
    %972 = vmatpush2.msra.mxu0 0.0
    %973 = vmatprep.subr.mxu0 0.0
    %974 = vmatpush2.msra.mxu0 0.0
    %975 = vmatprep.subr.mxu0 0.0
    %976 = vmatpush2.msra.mxu0 0.0
    %977 = vmatprep.subr.mxu0 0.0
    %978 = vmatpush2.msra.mxu0 0.0
    %979 = vmatprep.subr.mxu0 0.0
    %980 = vmatpush2.msra.mxu0 0.0
    %981 = vmatprep.subr.mxu0 0.0
    %982 = vmatpush2.msra.mxu0 0.0
    %983 = vmatprep.subr.mxu0 0.0
    %984 = vmatpush2.msra.mxu0 0.0
    %985 = vmatprep.subr.mxu0 0.0
    %986 = vmatpush2.msra.mxu0 0.0
    %987 = vmatprep.subr.mxu0 0.0
    %988 = vmatpush2.msra.mxu0 0.0
    %989 = vmatprep.subr.mxu0 0.0
    %990 = vmatpush2.msra.mxu0 0.0
    %991 = vmatprep.subr.mxu0 0.0
    %992 = vmatpush2.msra.mxu0 0.0
    %993 = vmatprep.subr.mxu0 0.0
    %994 = vmatpush2.msra.mxu0 0.0
    %995 = vmatprep.subr.mxu0 0.0
    %996 = vmatpush2.msra.mxu0 0.0
    %997 = vmatprep.subr.mxu0 0.0
    %998 = vmatpush2.msra.mxu0 0.0
    %999 = vmatprep.subr.mxu0 0.0
    %1000 = vmatpush2.msra.mxu0 0.0
    %1001 = vmatprep.subr.mxu0 0.0
    %1002 = vmatpush2.msra.mxu0 0.0
    %1003 = vmatprep.mubr.f32.mxu0 0.0
    %1004 = vmatmul.mubr.f32.gmra.mxu0 %v934
    %v1005 = vpop.f32.mrf.mxu0
    %v1006 = vadd.f32 %v925, %v1005
    %v1007 = vpop.f32.mrf.mxu0
    %1008 = vmatprep.mubr.f32.mxu0 0.0
    %1009 = vmatmul.mubr.f32.gmra.mxu0 %v937
    %v1010 = vpop.f32.mrf.mxu0
    %v1011 = vadd.f32 %v930, %v1010
    %v1012 = vpop.f32.mrf.mxu0
    %1013 = vdwg.mxu0
    %v1014 = vadd.f32 %v1006, %v336
    %v1015 = vadd.f32 %v1011, %v336
    %v1016 = vtanh.pop %v1014
    %v1017 = vtanh.pop %v1015
    %s1018 = scalar_lea.vmem %s1, 80
    %v1019 = vld [vmem:[%s1018] sm:$0xff]
    %v1020 = vld [vmem:[%s1018 + $0x8] sm:$0xff]
    %v1022 = vsel %vm171, %v1016, 0
    %v1025 = vsel %vm171, %v1017, 0
    %1027 = vmatprep.subr.mxu0 0.0
    %1028 = vmatpush1.msra.mxu0 0.0
    %1029 = vmatprep.subr.mxu0 0.0
    %1030 = vmatpush1.msra.mxu0 0.0
    %1031 = vmatprep.subr.mxu0 0.0
    %1032 = vmatpush1.msra.mxu0 0.0
    %1033 = vmatprep.subr.mxu0 0.0
    %1034 = vmatpush1.msra.mxu0 0.0
    %1035 = vmatprep.subr.mxu0 0.0
    %1036 = vmatpush1.msra.mxu0 0.0
    %1037 = vmatprep.subr.mxu0 0.0
    %1038 = vmatpush1.msra.mxu0 0.0
    %1039 = vmatprep.subr.mxu0 0.0
    %1040 = vmatpush1.msra.mxu0 0.0
    %1041 = vmatprep.subr.mxu0 0.0
    %1042 = vmatpush1.msra.mxu0 0.0
    %1043 = vmatprep.subr.mxu0 0.0
    %1044 = vmatpush1.msra.mxu0 0.0
    %1045 = vmatprep.subr.mxu0 0.0
    %1046 = vmatpush1.msra.mxu0 0.0
    %1047 = vmatprep.subr.mxu0 0.0
    %1048 = vmatpush1.msra.mxu0 0.0
    %1049 = vmatprep.subr.mxu0 0.0
    %1050 = vmatpush1.msra.mxu0 0.0
    %1051 = vmatprep.subr.mxu0 0.0
    %1052 = vmatpush1.msra.mxu0 %v167
    %1053 = vmatprep.subr.mxu0 0.0
    %1054 = vmatpush1.msra.mxu0 %v166
    %1055 = vmatprep.subr.mxu0 0.0
    %1056 = vmatpush1.msra.mxu0 %v165
    %1057 = vmatprep.subr.mxu0 0.0
    %1058 = vmatpush1.msra.mxu0 %v164
    %1059 = vmatprep.subr.mxu0 0.0
    %1060 = vmatpush2.msra.mxu0 0.0
    %1061 = vmatprep.subr.mxu0 0.0
    %1062 = vmatpush2.msra.mxu0 0.0
    %1063 = vmatprep.subr.mxu0 0.0
    %1064 = vmatpush2.msra.mxu0 0.0
    %1065 = vmatprep.subr.mxu0 0.0
    %1066 = vmatpush2.msra.mxu0 0.0
    %1067 = vmatprep.subr.mxu0 0.0
    %1068 = vmatpush2.msra.mxu0 0.0
    %1069 = vmatprep.subr.mxu0 0.0
    %1070 = vmatpush2.msra.mxu0 0.0
    %1071 = vmatprep.subr.mxu0 0.0
    %1072 = vmatpush2.msra.mxu0 0.0
    %1073 = vmatprep.subr.mxu0 0.0
    %1074 = vmatpush2.msra.mxu0 0.0
    %1075 = vmatprep.subr.mxu0 0.0
    %1076 = vmatpush2.msra.mxu0 0.0
    %1077 = vmatprep.subr.mxu0 0.0
    %1078 = vmatpush2.msra.mxu0 0.0
    %1079 = vmatprep.subr.mxu0 0.0
    %1080 = vmatpush2.msra.mxu0 0.0
    %1081 = vmatprep.subr.mxu0 0.0
    %1082 = vmatpush2.msra.mxu0 0.0
    %1083 = vmatprep.subr.mxu0 0.0
    %1084 = vmatpush2.msra.mxu0 0.0
    %1085 = vmatprep.subr.mxu0 0.0
    %1086 = vmatpush2.msra.mxu0 0.0
    %1087 = vmatprep.subr.mxu0 0.0
    %1088 = vmatpush2.msra.mxu0 0.0
    %1089 = vmatprep.subr.mxu0 0.0
    %1090 = vmatpush2.msra.mxu0 0.0
    %1091 = vmatprep.mubr.f32.mxu0 0.0
    %1092 = vmatmul.mubr.f32.gmra.mxu0 %v1022
    %v1093 = vpop.f32.mrf.mxu0
    %v1094 = vadd.f32 0.0, %v1093
    %v1095 = vpop.f32.mrf.mxu0
    %1096 = vmatprep.mubr.f32.mxu0 0.0
    %1097 = vmatmul.mubr.f32.gmra.mxu0 %v1025
    %v1098 = vpop.f32.mrf.mxu0
    %v1099 = vadd.f32 0.0, %v1098
    %v1100 = vpop.f32.mrf.mxu0
    %1101 = vdwg.mxu0
    %v1103 = vsel %vm250, %v1019, 0
    %v1106 = vsel %vm250, %v1020, 0
    %1108 = vmatprep.subr.mxu0 0.0
    %1109 = vmatpush1.msra.mxu0 0.0
    %1110 = vmatprep.subr.mxu0 0.0
    %1111 = vmatpush1.msra.mxu0 0.0
    %1112 = vmatprep.subr.mxu0 0.0
    %1113 = vmatpush1.msra.mxu0 0.0
    %1114 = vmatprep.subr.mxu0 0.0
    %1115 = vmatpush1.msra.mxu0 0.0
    %1116 = vmatprep.subr.mxu0 0.0
    %1117 = vmatpush1.msra.mxu0 0.0
    %1118 = vmatprep.subr.mxu0 0.0
    %1119 = vmatpush1.msra.mxu0 0.0
    %1120 = vmatprep.subr.mxu0 0.0
    %1121 = vmatpush1.msra.mxu0 0.0
    %1122 = vmatprep.subr.mxu0 0.0
    %1123 = vmatpush1.msra.mxu0 0.0
    %1124 = vmatprep.subr.mxu0 0.0
    %1125 = vmatpush1.msra.mxu0 0.0
    %1126 = vmatprep.subr.mxu0 0.0
    %1127 = vmatpush1.msra.mxu0 0.0
    %1128 = vmatprep.subr.mxu0 0.0
    %1129 = vmatpush1.msra.mxu0 0.0
    %1130 = vmatprep.subr.mxu0 0.0
    %1131 = vmatpush1.msra.mxu0 0.0
    %1132 = vmatprep.subr.mxu0 0.0
    %1133 = vmatpush1.msra.mxu0 0.0
    %1134 = vmatprep.subr.mxu0 0.0
    %1135 = vmatpush1.msra.mxu0 0.0
    %1136 = vmatprep.subr.mxu0 0.0
    %1137 = vmatpush1.msra.mxu0 0.0
    %1138 = vmatprep.subr.mxu0 0.0
    %1139 = vmatpush1.msra.mxu0 %v163
    %1140 = vmatprep.subr.mxu0 0.0
    %1141 = vmatpush2.msra.mxu0 0.0
    %1142 = vmatprep.subr.mxu0 0.0
    %1143 = vmatpush2.msra.mxu0 0.0
    %1144 = vmatprep.subr.mxu0 0.0
    %1145 = vmatpush2.msra.mxu0 0.0
    %1146 = vmatprep.subr.mxu0 0.0
    %1147 = vmatpush2.msra.mxu0 0.0
    %1148 = vmatprep.subr.mxu0 0.0
    %1149 = vmatpush2.msra.mxu0 0.0
    %1150 = vmatprep.subr.mxu0 0.0
    %1151 = vmatpush2.msra.mxu0 0.0
    %1152 = vmatprep.subr.mxu0 0.0
    %1153 = vmatpush2.msra.mxu0 0.0
    %1154 = vmatprep.subr.mxu0 0.0
    %1155 = vmatpush2.msra.mxu0 0.0
    %1156 = vmatprep.subr.mxu0 0.0
    %1157 = vmatpush2.msra.mxu0 0.0
    %1158 = vmatprep.subr.mxu0 0.0
    %1159 = vmatpush2.msra.mxu0 0.0
    %1160 = vmatprep.subr.mxu0 0.0
    %1161 = vmatpush2.msra.mxu0 0.0
    %1162 = vmatprep.subr.mxu0 0.0
    %1163 = vmatpush2.msra.mxu0 0.0
    %1164 = vmatprep.subr.mxu0 0.0
    %1165 = vmatpush2.msra.mxu0 0.0
    %1166 = vmatprep.subr.mxu0 0.0
    %1167 = vmatpush2.msra.mxu0 0.0
    %1168 = vmatprep.subr.mxu0 0.0
    %1169 = vmatpush2.msra.mxu0 0.0
    %1170 = vmatprep.subr.mxu0 0.0
    %1171 = vmatpush2.msra.mxu0 0.0
    %1172 = vmatprep.mubr.f32.mxu0 0.0
    %1173 = vmatmul.mubr.f32.gmra.mxu0 %v1103
    %v1174 = vpop.f32.mrf.mxu0
    %v1175 = vadd.f32 %v1094, %v1174
    %v1176 = vpop.f32.mrf.mxu0
    %1177 = vmatprep.mubr.f32.mxu0 0.0
    %1178 = vmatmul.mubr.f32.gmra.mxu0 %v1106
    %v1179 = vpop.f32.mrf.mxu0
    %v1180 = vadd.f32 %v1099, %v1179
    %v1181 = vpop.f32.mrf.mxu0
    %1182 = vdwg.mxu0
    %v1183 = vadd.f32 %v1175, %v336
    %v1184 = vadd.f32 %v1180, %v336
    %v1185 = vtanh.pop %v1183
    %v1186 = vtanh.pop %v1184
    %1187 = vst.msk [vmem:[#allocation2] sm:$0xff] %vm171, %v155
    %1188 = vst.msk [vmem:[#allocation2 + $0x8] sm:$0xff] %vm171, %v160
    %1191 = vrot.lane.b32.xlu0 %v1185, 32
    %v1192 = vpop.permute.xlu0 %1191
    %1193 = vrot.lane.b32.xlu0 %v1186, 32
    %v1194 = vpop.permute.xlu0 %1193
    %vm1197 = vcmask 523520
    %1198 = vst.msk [vmem:[#allocation2] sm:$0xff] %vm1197, %v1192
    %1199 = vst.msk [vmem:[#allocation2 + $0x8] sm:$0xff] %vm1197, %v1194
    %v1200 = vld [vmem:[#allocation2] sm:$0xff]
    %v1201 = vld [vmem:[#allocation2 + $0x8] sm:$0xff]
    %v1202 = vmax.f32 %v1200, 0.0
    %v1203 = vmax.f32 %v1201, 0.0
    %v1204 = vld [vmem:[%s7] sm:$0xff]
    %v1205 = vld [vmem:[%s7 + $0x8] sm:$0xff]
    %v1206 = vld [vmem:[%s7 + $0x10] sm:$0xff]
    %v1207 = vld [vmem:[%s7 + $0x18] sm:$0xff]
    %v1208 = vld [vmem:[%s7 + $0x20] sm:$0xff]
    %v1209 = vld [vmem:[%s7 + $0x28] sm:$0xff]
    %v1210 = vld [vmem:[%s7 + $0x30] sm:$0xff]
    %v1211 = vld [vmem:[%s7 + $0x38] sm:$0xff]
    %v1212 = vld [vmem:[%s8] sm:$0x1]
    %v1214 = vlaneseq
    %v1215 = vshrl.u32 %v1214, 7
    %v1216 = vsub.s32 0, %v1215
    %v1217 = vrot.slane %v1212, %v1216
    %vm1219 = vcmask 523264
    %v1221 = vsel %vm1219, %v1202, 0
    %v1224 = vsel %vm1219, %v1203, 0
    %1226 = vmatprep.subr.mxu0 0.0
    %1227 = vmatpush1.msra.mxu0 0.0
    %1228 = vmatprep.subr.mxu0 0.0
    %1229 = vmatpush1.msra.mxu0 0.0
    %1230 = vmatprep.subr.mxu0 0.0
    %1231 = vmatpush1.msra.mxu0 0.0
    %1232 = vmatprep.subr.mxu0 0.0
    %1233 = vmatpush1.msra.mxu0 0.0
    %1234 = vmatprep.subr.mxu0 0.0
    %1235 = vmatpush1.msra.mxu0 0.0
    %1236 = vmatprep.subr.mxu0 0.0
    %1237 = vmatpush1.msra.mxu0 0.0
    %1238 = vmatprep.subr.mxu0 0.0
    %1239 = vmatpush1.msra.mxu0 0.0
    %1240 = vmatprep.subr.mxu0 0.0
    %1241 = vmatpush1.msra.mxu0 0.0
    %1242 = vmatprep.subr.mxu0 0.0
    %1243 = vmatpush1.msra.mxu0 %v1211
    %1244 = vmatprep.subr.mxu0 0.0
    %1245 = vmatpush1.msra.mxu0 %v1210
    %1246 = vmatprep.subr.mxu0 0.0
    %1247 = vmatpush1.msra.mxu0 %v1209
    %1248 = vmatprep.subr.mxu0 0.0
    %1249 = vmatpush1.msra.mxu0 %v1208
    %1250 = vmatprep.subr.mxu0 0.0
    %1251 = vmatpush1.msra.mxu0 %v1207
    %1252 = vmatprep.subr.mxu0 0.0
    %1253 = vmatpush1.msra.mxu0 %v1206
    %1254 = vmatprep.subr.mxu0 0.0
    %1255 = vmatpush1.msra.mxu0 %v1205
    %1256 = vmatprep.subr.mxu0 0.0
    %1257 = vmatpush1.msra.mxu0 %v1204
    %1258 = vmatprep.subr.mxu0 0.0
    %1259 = vmatpush2.msra.mxu0 0.0
    %1260 = vmatprep.subr.mxu0 0.0
    %1261 = vmatpush2.msra.mxu0 0.0
    %1262 = vmatprep.subr.mxu0 0.0
    %1263 = vmatpush2.msra.mxu0 0.0
    %1264 = vmatprep.subr.mxu0 0.0
    %1265 = vmatpush2.msra.mxu0 0.0
    %1266 = vmatprep.subr.mxu0 0.0
    %1267 = vmatpush2.msra.mxu0 0.0
    %1268 = vmatprep.subr.mxu0 0.0
    %1269 = vmatpush2.msra.mxu0 0.0
    %1270 = vmatprep.subr.mxu0 0.0
    %1271 = vmatpush2.msra.mxu0 0.0
    %1272 = vmatprep.subr.mxu0 0.0
    %1273 = vmatpush2.msra.mxu0 0.0
    %1274 = vmatprep.subr.mxu0 0.0
    %1275 = vmatpush2.msra.mxu0 0.0
    %1276 = vmatprep.subr.mxu0 0.0
    %1277 = vmatpush2.msra.mxu0 0.0
    %1278 = vmatprep.subr.mxu0 0.0
    %1279 = vmatpush2.msra.mxu0 0.0
    %1280 = vmatprep.subr.mxu0 0.0
    %1281 = vmatpush2.msra.mxu0 0.0
    %1282 = vmatprep.subr.mxu0 0.0
    %1283 = vmatpush2.msra.mxu0 0.0
    %1284 = vmatprep.subr.mxu0 0.0
    %1285 = vmatpush2.msra.mxu0 0.0
    %1286 = vmatprep.subr.mxu0 0.0
    %1287 = vmatpush2.msra.mxu0 0.0
    %1288 = vmatprep.subr.mxu0 0.0
    %1289 = vmatpush2.msra.mxu0 0.0
    %1290 = vmatprep.mubr.f32.mxu0 0.0
    %1291 = vmatmul.mubr.f32.gmra.mxu0 %v1221
    %v1292 = vpop.f32.mrf.mxu0
    %v1293 = vadd.f32 %v1217, %v1292
    %v1294 = vpop.f32.mrf.mxu0
    %1295 = vmatprep.mubr.f32.mxu0 0.0
    %1296 = vmatmul.mubr.f32.gmra.mxu0 %v1224
    %v1297 = vpop.f32.mrf.mxu0
    %v1298 = vadd.f32 %v1217, %v1297
    %v1299 = vpop.f32.mrf.mxu0
    %1300 = vdwg.mxu0
    %v1301 = vmax.f32 %v1293, 0.0
    %v1302 = vmax.f32 %v1298, 0.0
    %v1303 = vld [vmem:[%s9] sm:$0xff]
    %v1304 = vld [vmem:[%s9 + $0x8] sm:$0xff]
    %v1305 = vld [vmem:[%s9 + $0x10] sm:$0xff]
    %v1306 = vld [vmem:[%s9 + $0x18] sm:$0xff]
    %v1307 = vld [vmem:[%s9 + $0x20] sm:$0xff]
    %v1308 = vld [vmem:[%s9 + $0x28] sm:$0xff]
    %v1309 = vld [vmem:[%s9 + $0x30] sm:$0xff]
    %v1310 = vld [vmem:[%s9 + $0x38] sm:$0xff]
    %v1311 = vld [vmem:[%s9 + $0x40] sm:$0xff]
    %v1312 = vld [vmem:[%s9 + $0x48] sm:$0xff]
    %v1313 = vld [vmem:[%s9 + $0x50] sm:$0xff]
    %v1314 = vld [vmem:[%s9 + $0x58] sm:$0xff]
    %v1315 = vld [vmem:[%s9 + $0x60] sm:$0xff]
    %v1316 = vld [vmem:[%s9 + $0x68] sm:$0xff]
    %v1317 = vld [vmem:[%s9 + $0x70] sm:$0xff]
    %v1318 = vld [vmem:[%s9 + $0x78] sm:$0xff]
    %v1319 = vld [vmem:[%s10] sm:$0x1]
    %v1321 = vlaneseq
    %v1322 = vshrl.u32 %v1321, 7
    %v1323 = vsub.s32 0, %v1322
    %v1324 = vrot.slane %v1319, %v1323
    %1326 = vmatprep.subr.mxu0 0.0
    %1327 = vmatpush1.msra.mxu0 %v1318
    %1328 = vmatprep.subr.mxu0 0.0
    %1329 = vmatpush1.msra.mxu0 %v1317
    %1330 = vmatprep.subr.mxu0 0.0
    %1331 = vmatpush1.msra.mxu0 %v1316
    %1332 = vmatprep.subr.mxu0 0.0
    %1333 = vmatpush1.msra.mxu0 %v1315
    %1334 = vmatprep.subr.mxu0 0.0
    %1335 = vmatpush1.msra.mxu0 %v1314
    %1336 = vmatprep.subr.mxu0 0.0
    %1337 = vmatpush1.msra.mxu0 %v1313
    %1338 = vmatprep.subr.mxu0 0.0
    %1339 = vmatpush1.msra.mxu0 %v1312
    %1340 = vmatprep.subr.mxu0 0.0
    %1341 = vmatpush1.msra.mxu0 %v1311
    %1342 = vmatprep.subr.mxu0 0.0
    %1343 = vmatpush1.msra.mxu0 %v1310
    %1344 = vmatprep.subr.mxu0 0.0
    %1345 = vmatpush1.msra.mxu0 %v1309
    %1346 = vmatprep.subr.mxu0 0.0
    %1347 = vmatpush1.msra.mxu0 %v1308
    %1348 = vmatprep.subr.mxu0 0.0
    %1349 = vmatpush1.msra.mxu0 %v1307
    %1350 = vmatprep.subr.mxu0 0.0
    %1351 = vmatpush1.msra.mxu0 %v1306
    %1352 = vmatprep.subr.mxu0 0.0
    %1353 = vmatpush1.msra.mxu0 %v1305
    %1354 = vmatprep.subr.mxu0 0.0
    %1355 = vmatpush1.msra.mxu0 %v1304
    %1356 = vmatprep.subr.mxu0 0.0
    %1357 = vmatpush1.msra.mxu0 %v1303
    %1358 = vmatprep.subr.mxu0 0.0
    %1359 = vmatpush2.msra.mxu0 0.0
    %1360 = vmatprep.subr.mxu0 0.0
    %1361 = vmatpush2.msra.mxu0 0.0
    %1362 = vmatprep.subr.mxu0 0.0
    %1363 = vmatpush2.msra.mxu0 0.0
    %1364 = vmatprep.subr.mxu0 0.0
    %1365 = vmatpush2.msra.mxu0 0.0
    %1366 = vmatprep.subr.mxu0 0.0
    %1367 = vmatpush2.msra.mxu0 0.0
    %1368 = vmatprep.subr.mxu0 0.0
    %1369 = vmatpush2.msra.mxu0 0.0
    %1370 = vmatprep.subr.mxu0 0.0
    %1371 = vmatpush2.msra.mxu0 0.0
    %1372 = vmatprep.subr.mxu0 0.0
    %1373 = vmatpush2.msra.mxu0 0.0
    %1374 = vmatprep.subr.mxu0 0.0
    %1375 = vmatpush2.msra.mxu0 0.0
    %1376 = vmatprep.subr.mxu0 0.0
    %1377 = vmatpush2.msra.mxu0 0.0
    %1378 = vmatprep.subr.mxu0 0.0
    %1379 = vmatpush2.msra.mxu0 0.0
    %1380 = vmatprep.subr.mxu0 0.0
    %1381 = vmatpush2.msra.mxu0 0.0
    %1382 = vmatprep.subr.mxu0 0.0
    %1383 = vmatpush2.msra.mxu0 0.0
    %1384 = vmatprep.subr.mxu0 0.0
    %1385 = vmatpush2.msra.mxu0 0.0
    %1386 = vmatprep.subr.mxu0 0.0
    %1387 = vmatpush2.msra.mxu0 0.0
    %1388 = vmatprep.subr.mxu0 0.0
    %1389 = vmatpush2.msra.mxu0 0.0
    %1390 = vmatprep.mubr.f32.mxu0 0.0
    %1391 = vmatmul.mubr.f32.gmra.mxu0 %v1301
    %v1392 = vpop.f32.mrf.mxu0
    %v1393 = vadd.f32 %v1324, %v1392
    %v1394 = vpop.f32.mrf.mxu0
    %1395 = vmatprep.mubr.f32.mxu0 0.0
    %1396 = vmatmul.mubr.f32.gmra.mxu0 %v1302
    %v1397 = vpop.f32.mrf.mxu0
    %v1398 = vadd.f32 %v1324, %v1397
    %v1399 = vpop.f32.mrf.mxu0
    %1400 = vdwg.mxu0
    %v1401 = vmax.f32 %v1393, 0.0
    %v1402 = vmax.f32 %v1398, 0.0
    %v1403 = vld [vmem:[%s11] sm:$0xff]
    %v1404 = vld [vmem:[%s11 + $0x8] sm:$0xff]
    %v1405 = vld [vmem:[%s11 + $0x10] sm:$0xff]
    %v1406 = vld [vmem:[%s11 + $0x18] sm:$0xff]
    %v1407 = vld [vmem:[%s11 + $0x20] sm:$0xff]
    %v1408 = vld [vmem:[%s11 + $0x28] sm:$0xff]
    %v1409 = vld [vmem:[%s11 + $0x30] sm:$0xff]
    %v1410 = vld [vmem:[%s11 + $0x38] sm:$0xff]
    %v1411 = vld [vmem:[%s11 + $0x40] sm:$0xff]
    %v1412 = vld [vmem:[%s11 + $0x48] sm:$0xff]
    %v1413 = vld [vmem:[%s11 + $0x50] sm:$0xff]
    %v1414 = vld [vmem:[%s11 + $0x58] sm:$0xff]
    %v1415 = vld [vmem:[%s11 + $0x60] sm:$0xff]
    %v1416 = vld [vmem:[%s11 + $0x68] sm:$0xff]
    %v1417 = vld [vmem:[%s11 + $0x70] sm:$0xff]
    %v1418 = vld [vmem:[%s11 + $0x78] sm:$0xff]
    %v1419 = vld [vmem:[%s12] sm:$0x1]
    %v1421 = vlaneseq
    %v1422 = vshrl.u32 %v1421, 7
    %v1423 = vsub.s32 0, %v1422
    %v1424 = vrot.slane %v1419, %v1423
    %1426 = vmatprep.subr.mxu0 0.0
    %1427 = vmatpush1.msra.mxu0 %v1418
    %1428 = vmatprep.subr.mxu0 0.0
    %1429 = vmatpush1.msra.mxu0 %v1417
    %1430 = vmatprep.subr.mxu0 0.0
    %1431 = vmatpush1.msra.mxu0 %v1416
    %1432 = vmatprep.subr.mxu0 0.0
    %1433 = vmatpush1.msra.mxu0 %v1415
    %1434 = vmatprep.subr.mxu0 0.0
    %1435 = vmatpush1.msra.mxu0 %v1414
    %1436 = vmatprep.subr.mxu0 0.0
    %1437 = vmatpush1.msra.mxu0 %v1413
    %1438 = vmatprep.subr.mxu0 0.0
    %1439 = vmatpush1.msra.mxu0 %v1412
    %1440 = vmatprep.subr.mxu0 0.0
    %1441 = vmatpush1.msra.mxu0 %v1411
    %1442 = vmatprep.subr.mxu0 0.0
    %1443 = vmatpush1.msra.mxu0 %v1410
    %1444 = vmatprep.subr.mxu0 0.0
    %1445 = vmatpush1.msra.mxu0 %v1409
    %1446 = vmatprep.subr.mxu0 0.0
    %1447 = vmatpush1.msra.mxu0 %v1408
    %1448 = vmatprep.subr.mxu0 0.0
    %1449 = vmatpush1.msra.mxu0 %v1407
    %1450 = vmatprep.subr.mxu0 0.0
    %1451 = vmatpush1.msra.mxu0 %v1406
    %1452 = vmatprep.subr.mxu0 0.0
    %1453 = vmatpush1.msra.mxu0 %v1405
    %1454 = vmatprep.subr.mxu0 0.0
    %1455 = vmatpush1.msra.mxu0 %v1404
    %1456 = vmatprep.subr.mxu0 0.0
    %1457 = vmatpush1.msra.mxu0 %v1403
    %1458 = vmatprep.subr.mxu0 0.0
    %1459 = vmatpush2.msra.mxu0 0.0
    %1460 = vmatprep.subr.mxu0 0.0
    %1461 = vmatpush2.msra.mxu0 0.0
    %1462 = vmatprep.subr.mxu0 0.0
    %1463 = vmatpush2.msra.mxu0 0.0
    %1464 = vmatprep.subr.mxu0 0.0
    %1465 = vmatpush2.msra.mxu0 0.0
    %1466 = vmatprep.subr.mxu0 0.0
    %1467 = vmatpush2.msra.mxu0 0.0
    %1468 = vmatprep.subr.mxu0 0.0
    %1469 = vmatpush2.msra.mxu0 0.0
    %1470 = vmatprep.subr.mxu0 0.0
    %1471 = vmatpush2.msra.mxu0 0.0
    %1472 = vmatprep.subr.mxu0 0.0
    %1473 = vmatpush2.msra.mxu0 0.0
    %1474 = vmatprep.subr.mxu0 0.0
    %1475 = vmatpush2.msra.mxu0 0.0
    %1476 = vmatprep.subr.mxu0 0.0
    %1477 = vmatpush2.msra.mxu0 0.0
    %1478 = vmatprep.subr.mxu0 0.0
    %1479 = vmatpush2.msra.mxu0 0.0
    %1480 = vmatprep.subr.mxu0 0.0
    %1481 = vmatpush2.msra.mxu0 0.0
    %1482 = vmatprep.subr.mxu0 0.0
    %1483 = vmatpush2.msra.mxu0 0.0
    %1484 = vmatprep.subr.mxu0 0.0
    %1485 = vmatpush2.msra.mxu0 0.0
    %1486 = vmatprep.subr.mxu0 0.0
    %1487 = vmatpush2.msra.mxu0 0.0
    %1488 = vmatprep.subr.mxu0 0.0
    %1489 = vmatpush2.msra.mxu0 0.0
    %1490 = vmatprep.mubr.f32.mxu0 0.0
    %1491 = vmatmul.mubr.f32.gmra.mxu0 %v1401
    %v1492 = vpop.f32.mrf.mxu0
    %v1493 = vadd.f32 %v1424, %v1492
    %v1494 = vpop.f32.mrf.mxu0
    %1495 = vmatprep.mubr.f32.mxu0 0.0
    %1496 = vmatmul.mubr.f32.gmra.mxu0 %v1402
    %v1497 = vpop.f32.mrf.mxu0
    %v1498 = vadd.f32 %v1424, %v1497
    %v1499 = vpop.f32.mrf.mxu0
    %1500 = vdwg.mxu0
    %1501 = vst [vmem:[#allocation3] sm:$0xff] %v1493
    %1502 = vst [vmem:[#allocation3 + $0x8] sm:$0xff] %v1498
    // Predicated region
    $region54: #{psi_forward.1} parent=1 // pred_check
      _
    $region55: #{psi_forward.1} parent=1 // pred_check_branch
      %1504 = sbr.rel (0) target = $region57
    $region56: #{psi_forward.1} parent=1 // pred_region
      %s1506 = ssub.s32 256, 256
      %1507 = vsyncadd [#allocation4], %s1506
      %s1508 = sshll.u32 [#allocation3], 4
      %s1509 = int_to_ptr.vmem [resolvable:$true] %s1508
      %1514 = dma.vmem_to_hbm [thread:$0]  %s1509, 256, %s13, [#allocation4], 128, 128, 8
    $region57: #{psi_forward.1} parent=1 // pred_fallthru
      _
    // Predicated region
    $region58: #{psi_forward.1} parent=1 // pred_check
      _
    $region59: #{psi_forward.1} parent=1 // pred_check_branch
      %1516 = sbr.rel (0) target = $region61
    $region60: #{psi_forward.1} parent=1 // pred_region
      %1517 = dma.done [#allocation4], 256
    $region61: #{psi_forward.1} parent=1 // pred_fallthru
      _
    %1518 = vsyncpa [#allocation4], 1

</llo_original>
